<compile_context>
chip_gen: v7x
topology: tpu7x:2x2x1
jax: 0.10.0
libtpu: 0.0.40
codegen_flags: <defaults>
</compile_context>

<pallas_src>
import functools
import math
import random

import jax
import jax.numpy as jnp
from jax import lax
from jax.experimental import pallas as pl
from jax.experimental.pallas import tpu as pltpu


# ----------------------------------------------------------------------------
# Host-side parameter sampling (replicates torchvision RandomAffine.get_params
# and F._get_inverse_affine_matrix). Pure Python glue, not kernel work.
# ----------------------------------------------------------------------------
def sample_affine_params(degrees, translate_x, translate_y, img_size, rng):
    angle = rng.uniform(-degrees, degrees)
    max_dx = float(translate_x * img_size[0])
    max_dy = float(translate_y * img_size[1])
    tx = int(round(rng.uniform(-max_dx, max_dx)))
    ty = int(round(rng.uniform(-max_dy, max_dy)))
    scale = 1.0
    shear = (0.0, 0.0)
    return angle, (tx, ty), scale, shear


def inverse_affine_matrix(center, angle, translate, scale, shear):
    rot = math.radians(angle)
    sx, sy = (math.radians(s) for s in shear)
    cx, cy = center
    tx, ty = translate
    a = math.cos(rot - sy) / math.cos(sy)
    b = -math.cos(rot - sy) * math.tan(sx) / math.cos(sy) - math.sin(rot)
    c = math.sin(rot - sy) / math.cos(sy)
    d = -math.sin(rot - sy) * math.tan(sx) / math.cos(sy) + math.cos(rot)
    m = [d, -b, 0.0, -c, a, 0.0]
    m = [v / scale for v in m]
    m[2] += m[0] * (-cx - tx) + m[1] * (-cy - ty)
    m[5] += m[3] * (-cx - tx) + m[4] * (-cy - ty)
    m[2] += cx
    m[5] += cy
    return m  # [m00, m01, m02, m10, m11, m12]


# ----------------------------------------------------------------------------
# Pallas kernel: q-tiled one-hot selection matmul shared across batch & pair.
# ----------------------------------------------------------------------------
def _pair_affine_kernel(src_ref, valid_ref, x_ref, o_ref, acc_ref, *,
                        compute_dtype, precision):
    q = pl.program_id(1)
    nq = pl.num_programs(1)
    TILE_Q = x_ref.shape[1]
    TILE_P = o_ref.shape[1]

    @pl.when(q == 0)
    def _init():
        acc_ref[...] = jnp.zeros_like(acc_ref)

    # One-hot selection strip, contraction axis (source pixel) leading:
    #   sel[q_local, p] = 1  iff  output pixel p reads source pixel q0+q_local.
    # The strip offset is folded into the (1, TILE_P) src row (cheap) rather
    # than the full (TILE_Q, TILE_P) iota (saves one int32 add per element).
    rel = src_ref[...] - q * TILE_Q                                # (1, TILE_P)
    sel = lax.broadcasted_iota(jnp.int32, (TILE_Q, TILE_P), 0) == rel
    sel = sel.astype(compute_dtype)                                # (TILE_Q, TILE_P)

    acc_ref[...] += lax.dot_general(
        x_ref[...].astype(compute_dtype), sel,
        (((1,), (0,)), ((), ())),
        precision=precision,
        preferred_element_type=jnp.float32)

    @pl.when(q == nq - 1)
    def _fin():
        # Zero-fill out-of-bounds outputs with a select (not a multiply, so
        # NaN/Inf source pixels still become exactly 0 outside the image).
        out = jnp.where(valid_ref[...] != 0, acc_ref[...],
                        jnp.zeros_like(acc_ref))
        o_ref[...] = out.astype(o_ref.dtype)


def _pick_tile(total, cap):
    """Largest multiple of 128 that divides `total` (itself a multiple of 128)
    and is <= cap."""
    cap = max(128, min(cap, total))
    best = 128
    t = 128
    while t <= cap:
        if total % t == 0:
            best = t
        t += 128
    return best


def _vmem_capacity_bytes():
    try:
        return int(pltpu.get_tpu_info().vmem_capacity_bytes)
    except Exception:
        return 64 * 2**20   # conservative fallback: v7x per-TensorCore VMEM


@jax.jit
def pair_random_affine_pallas(x1, x2, matrix):
    """Apply the same inverse-affine warp (nearest, zero fill) to x1 and x2.

    matrix: f32[6] = [m00, m01, m02, m10, m11, m12] (inverse affine matrix,
    image-center origin).  Passed as a traced array so new random draws do not
    trigger a retrace/recompile.
    """
    assert x1.shape == x2.shape and x1.dtype == x2.dtype
    N, C, H, W = x1.shape
    NC = N * C
    M = 2 * NC
    HW = H * W
    HW_pad = ((HW + 127) // 128) * 128
    pad = HW_pad - HW

    matrix = matrix.astype(jnp.float32)
    m00, m01, m02, m10, m11, m12 = (matrix[i] for i in range(6))

    # One-time O(HW) source-index / validity precompute (shared by every plane
    # of both images), lane-dense (1, HW_pad).
    p_idx = jnp.arange(HW, dtype=jnp.int32)
    row = (p_idx // W).astype(jnp.float32)
    col = (p_idx % W).astype(jnp.float32)
    x_out = col - (W * 0.5) + 0.5
    y_out = row - (H * 0.5) + 0.5
    src_x = m00 * x_out + m01 * y_out + m02 + (W * 0.5 - 0.5)
    src_y = m10 * x_out + m11 * y_out + m12 + (H * 0.5 - 0.5)
    # TODO(synk): jnp.round is round-half-to-even; torch CUDA grid_sample
    # nearest rounds half away from zero -- validate exact-.5 ties in a golden
    # test against torchvision.
    ix = jnp.round(src_x)
    iy = jnp.round(src_y)
    valid = (ix >= 0.0) & (ix <= float(W - 1)) & (iy >= 0.0) & (iy <= float(H - 1))
    src = (jnp.clip(iy, 0.0, float(H - 1)) * float(W)
           + jnp.clip(ix, 0.0, float(W - 1))).astype(jnp.int32)
    src = jnp.pad(src, (0, pad)).reshape(1, HW_pad)
    valid_f = jnp.pad(valid.astype(jnp.float32), (0, pad)).reshape(1, HW_pad)

    # Stack the pair wrapper-side: one lane-dense (2*NC, HW_pad) MXU LHS.
    xs = jnp.concatenate([x1.reshape(NC, HW), x2.reshape(NC, HW)], axis=0)
    if pad:
        xs = jnp.pad(xs, ((0, 0), (0, pad)))

    # MXU/VPU dtype: bf16 in -> bf16 sel (0/1 exact); otherwise f32 with
    # HIGHEST precision so gathered f32 pixels are exact copies.
    if x1.dtype == jnp.bfloat16:
        compute_dtype, precision = jnp.bfloat16, None
    else:
        compute_dtype, precision = jnp.float32, lax.Precision.HIGHEST

    # Generation-aware tiling: bigger strips on 128 MiB parts (v5e/v6e),
    # conservative on 64 MiB v7x; TILE_P capped at HW_pad//2 so the parallel
    # p axis has >= 2 tiles (both v7x TensorCores get work when possible).
    vmem_cap = _vmem_capacity_bytes()
    big_vmem = vmem_cap >= 100 * 2**20
    tile_p_cap = min(4096 if big_vmem else 2048, max(128, HW_pad // 2))
    tile_q_cap = 1024 if big_vmem else 512
    TILE_P = _pick_tile(HW_pad, tile_p_cap)
    TILE_Q = _pick_tile(HW_pad, tile_q_cap)

    in_bytes = jnp.dtype(x1.dtype).itemsize
    sel_bytes = jnp.dtype(compute_dtype).itemsize

    def _vmem_est(tp, tq):
        return (2 * M * tq * in_bytes          # stacked-LHS blocks (dbl-buffered)
                + 2 * M * tp * in_bytes        # output blocks (dbl-buffered)
                + 2 * 2 * tp * 4               # src + valid blocks
                + M * tp * 4                   # f32 accumulator scratch
                + tq * tp * (sel_bytes + 5)    # sel strip + iota/cmp temporaries
                + M * tq * 4)                  # cast LHS temp

    budget = (vmem_cap * 7) // 10              # leave Mosaic internal headroom
    for _ in range(16):                        # shrink tiles if estimate too big
        if 2 * _vmem_est(TILE_P, TILE_Q) <= budget:
            break
        if TILE_Q >= TILE_P and TILE_Q > 128:
            TILE_Q = _pick_tile(HW_pad, TILE_Q // 2)
        elif TILE_P > 128:
            TILE_P = _pick_tile(HW_pad, TILE_P // 2)
        else:
            break

    n_p = HW_pad // TILE_P
    n_q = HW_pad // TILE_Q
    vmem_limit = int(min(budget, max(32 * 2**20, 2 * _vmem_est(TILE_P, TILE_Q))))

    kernel = functools.partial(_pair_affine_kernel,
                               compute_dtype=compute_dtype,
                               precision=precision)

    ys = pl.pallas_call(
        kernel,
        out_shape=jax.ShapeDtypeStruct((M, HW_pad), x1.dtype),
        grid_spec=pltpu.PrefetchScalarGridSpec(
            num_scalar_prefetch=0,
            grid=(n_p, n_q),
            in_specs=[
                pl.BlockSpec((1, TILE_P), lambda p, q: (0, p)),   # src indices
                pl.BlockSpec((1, TILE_P), lambda p, q: (0, p)),   # valid mask
                pl.BlockSpec((M, TILE_Q), lambda p, q: (0, q)),   # stacked pair
            ],
            out_specs=pl.BlockSpec((M, TILE_P), lambda p, q: (0, p)),
            scratch_shapes=[pltpu.VMEM((M, TILE_P), jnp.float32)],
        ),
        compiler_params=pltpu.CompilerParams(
            dimension_semantics=("parallel", "arbitrary"),
            vmem_limit_bytes=vmem_limit,
        ),
    )(src, valid_f, xs)

    y = ys[:, :HW]
    y1 = y[:NC].reshape(N, C, H, W)
    y2 = y[NC:].reshape(N, C, H, W)
    return y1, y2


# ----------------------------------------------------------------------------
# Pure-JAX reference (same math, same f32 matrix) for a correctness check.
# ----------------------------------------------------------------------------
def _reference(x, matrix):
    N, C, H, W = x.shape
    matrix = jnp.asarray(matrix, dtype=jnp.float32)
    m00, m01, m02, m10, m11, m12 = (matrix[i] for i in range(6))
    row = jnp.arange(H, dtype=jnp.float32)[:, None] * jnp.ones((1, W), jnp.float32)
    col = jnp.ones((H, 1), jnp.float32) * jnp.arange(W, dtype=jnp.float32)[None, :]
    x_out = col - W * 0.5 + 0.5
    y_out = row - H * 0.5 + 0.5
    src_x = m00 * x_out + m01 * y_out + m02 + (W * 0.5 - 0.5)
    src_y = m10 * x_out + m11 * y_out + m12 + (H * 0.5 - 0.5)
    ix = jnp.round(src_x)
    iy = jnp.round(src_y)
    valid = (ix >= 0) & (ix <= W - 1) & (iy >= 0) & (iy <= H - 1)
    flat = (jnp.clip(iy, 0, H - 1) * W + jnp.clip(ix, 0, W - 1)).astype(jnp.int32)
    gathered = jnp.take(x.reshape(N, C, H * W), flat.reshape(-1), axis=2)
    gathered = gathered.reshape(N, C, H, W)
    return jnp.where(valid[None, None], gathered, 0.0).astype(x.dtype)


if __name__ == "__main__":
    N, C, H, W = 2, 4, 16, 16
    key = jax.random.PRNGKey(0)
    k1, k2 = jax.random.split(key)
    x1 = jax.random.normal(k1, (N, C, H, W), dtype=jnp.float32)
    x2 = jax.random.normal(k2, (N, C, H, W), dtype=jnp.float32)

    # Module config (degrees, translate_x, translate_y) + deterministic RNG.
    degrees, translate_x, translate_y = 15.0, 0.1, 0.1
    rng = random.Random(0)
    # NOTE: the original module passes img_size=(x1.shape[-2], x1.shape[1])
    # (height, channels) -- quirk reproduced exactly.
    img_size = (x1.shape[-2], x1.shape[1])
    angle, (tx, ty), scale, shear = sample_affine_params(
        degrees, translate_x, translate_y, img_size, rng)
    matrix_list = inverse_affine_matrix(
        [0.0, 0.0], angle, [float(tx), float(ty)], scale, shear)
    matrix = jnp.asarray(matrix_list, dtype=jnp.float32)

    y1, y2 = pair_random_affine_pallas(x1, x2, matrix)
    jax.block_until_ready((y1, y2))

    r1 = _reference(x1, matrix)
    r2 = _reference(x2, matrix)
    assert jnp.allclose(y1, r1, atol=1e-5), "x1 mismatch vs reference"
    assert jnp.allclose(y2, r2, atol=1e-5), "x2 mismatch vs reference"

    print("KERNEL_OK")
</pallas_src>

<mosaic_0001>
module attributes {stable_mosaic.version = 11 : i64} {
  func.func @_pair_affine_kernel(%arg0: i32, %arg1: i32, %arg2: memref<1x128xi32, #tpu.memory_space<vmem>>, %arg3: memref<1x128xf32, #tpu.memory_space<vmem>>, %arg4: memref<16x256xf32, #tpu.memory_space<vmem>>, %arg5: memref<16x128xf32, #tpu.memory_space<vmem>>, %arg6: memref<16x128xf32, #tpu.memory_space<vmem>>) attributes {dimension_semantics = [#tpu.dimension_semantics<parallel>, #tpu.dimension_semantics<arbitrary>], iteration_bounds = array<i64: 2, 1>, scalar_prefetch = 0 : i64, scratch_operands = 1 : i64, tpu.core_type = #tpu.core_type<tc>, window_params = [{transform_indices = @transform_0, window_bounds = array<i64: 1, 128>}, {transform_indices = @transform_1, window_bounds = array<i64: 1, 128>}, {transform_indices = @transform_2, window_bounds = array<i64: 16, 256>}, {transform_indices = @transform_3, window_bounds = array<i64: 16, 128>}]} {
    %c0_i32 = arith.constant 0 : i32
    %0 = arith.cmpi eq, %arg1, %c0_i32 : i32
    %1 = arith.extui %0 : i1 to i32
    %c0_i32_0 = arith.constant 0 : i32
    %2 = arith.cmpi ne, %1, %c0_i32_0 : i32
    scf.if %2 {
      %cst_10 = arith.constant 0.000000e+00 : f32
      %20 = vector.broadcast %cst_10 : f32 to vector<16x128xf32>
      %c0_11 = arith.constant 0 : index
      %c0_12 = arith.constant 0 : index
      %21 = vector.load %arg6[%c0_11, %c0_12] : memref<16x128xf32, #tpu.memory_space<vmem>>, vector<16x128xf32>
      tpu.vector_store %arg6[%c0_11, %c0_12], %20 {strides = array<i32>} : memref<16x128xf32, #tpu.memory_space<vmem>>, vector<16x128xf32>,
    } else {
    }
    %c0 = arith.constant 0 : index
    %c0_1 = arith.constant 0 : index
    %3 = vector.load %arg2[%c0, %c0_1] : memref<1x128xi32, #tpu.memory_space<vmem>>, vector<1x128xi32>
    %c256_i32 = arith.constant 256 : i32
    %4 = arith.muli %arg1, %c256_i32 : i32
    %5 = vector.broadcast %4 : i32 to vector<1x128xi32>
    %6 = arith.subi %3, %5 : vector<1x128xi32>
    %7 = tpu.iota {dimensions = array<i32: 0>} : vector<256x128xi32>
    %8 = vector.broadcast %6 : vector<1x128xi32> to vector<256x128xi32>
    %9 = arith.cmpi eq, %7, %8 : vector<256x128xi32>
    %10 = arith.extui %9 : vector<256x128xi1> to vector<256x128xi32>
    %11 = arith.sitofp %10 : vector<256x128xi32> to vector<256x128xf32>
    %c0_2 = arith.constant 0 : index
    %c0_3 = arith.constant 0 : index
    %12 = vector.load %arg6[%c0_2, %c0_3] : memref<16x128xf32, #tpu.memory_space<vmem>>, vector<16x128xf32>
    %c0_4 = arith.constant 0 : index
    %c0_5 = arith.constant 0 : index
    %13 = vector.load %arg4[%c0_4, %c0_5] : memref<16x256xf32, #tpu.memory_space<vmem>>, vector<16x256xf32>
    %cst = arith.constant dense<0.000000e+00> : vector<16x128xf32>
    %14 = tpu.matmul %13, %11, %cst {dimension_numbers = #tpu.dot_dimension_numbers<[1], [0], [0], [1], [0, 0, 1, 1], [], []>, precision = #tpu.contract_precision<fp32>} : vector<16x256xf32>, vector<256x128xf32>, vector<16x128xf32> -> vector<16x128xf32>
    %15 = arith.addf %12, %14 : vector<16x128xf32>
    %c0_6 = arith.constant 0 : index
    %c0_7 = arith.constant 0 : index
    %16 = vector.load %arg6[%c0_6, %c0_7] : memref<16x128xf32, #tpu.memory_space<vmem>>, vector<16x128xf32>
    tpu.vector_store %arg6[%c0_6, %c0_7], %15 {strides = array<i32>} : memref<16x128xf32, #tpu.memory_space<vmem>>, vector<16x128xf32>,
    %c0_i32_8 = arith.constant 0 : i32
    %17 = arith.cmpi eq, %arg1, %c0_i32_8 : i32
    %18 = arith.extui %17 : i1 to i32
    %c0_i32_9 = arith.constant 0 : i32
    %19 = arith.cmpi ne, %18, %c0_i32_9 : i32
    scf.if %19 {
      %c0_10 = arith.constant 0 : index
      %c0_11 = arith.constant 0 : index
      %20 = vector.load %arg3[%c0_10, %c0_11] : memref<1x128xf32, #tpu.memory_space<vmem>>, vector<1x128xf32>
      %cst_12 = arith.constant 0.000000e+00 : f32
      %21 = vector.broadcast %cst_12 : f32 to vector<1x128xf32>
      %22 = arith.cmpf one, %20, %21 : vector<1x128xf32>
      %c0_13 = arith.constant 0 : index
      %c0_14 = arith.constant 0 : index
      %23 = vector.load %arg6[%c0_13, %c0_14] : memref<16x128xf32, #tpu.memory_space<vmem>>, vector<16x128xf32>
      %cst_15 = arith.constant 0.000000e+00 : f32
      %24 = vector.broadcast %cst_15 : f32 to vector<16x128xf32>
      %25 = vector.shape_cast %22 : vector<1x128xi1> to vector<1x128xi1>
      %26 = vector.broadcast %25 : vector<1x128xi1> to vector<16x128xi1>
      %27 = arith.select %26, %23, %24 : vector<16x128xi1>, vector<16x128xf32>
      %c0_16 = arith.constant 0 : index
      %c0_17 = arith.constant 0 : index
      %28 = vector.load %arg5[%c0_16, %c0_17] : memref<16x128xf32, #tpu.memory_space<vmem>>, vector<16x128xf32>
      tpu.vector_store %arg5[%c0_16, %c0_17], %27 {strides = array<i32>} : memref<16x128xf32, #tpu.memory_space<vmem>>, vector<16x128xf32>,
    } else {
    }
    return
  }
  func.func @transform_0(%arg0: i32, %arg1: i32) -> (i32, i32) {
    %c0_i32 = arith.constant 0 : i32
    %c0_i32_0 = arith.constant 0 : i32
    return %c0_i32, %arg0 : i32, i32
  }
  func.func @transform_1(%arg0: i32, %arg1: i32) -> (i32, i32) {
    %c0_i32 = arith.constant 0 : i32
    %c0_i32_0 = arith.constant 0 : i32
    return %c0_i32, %arg0 : i32, i32
  }
  func.func @transform_2(%arg0: i32, %arg1: i32) -> (i32, i32) {
    %c0_i32 = arith.constant 0 : i32
    %c0_i32_0 = arith.constant 0 : i32
    return %c0_i32, %arg1 : i32, i32
  }
  func.func @transform_3(%arg0: i32, %arg1: i32) -> (i32, i32) {
    %c0_i32 = arith.constant 0 : i32
    %c0_i32_0 = arith.constant 0 : i32
    return %c0_i32, %arg0 : i32, i32
  }
}

</mosaic_0001>

<llo_original>
// kernel: pair_random_affine_pallas.1
$region0: #{pair_random_affine_pallas.1}
  #allocation0 [shape = 'u32[]', space=smem, size = 0x4, offset = 0x4, fixed_abs, tag = 'smem constant byte address 0x4 - core index']
  #allocation1 [shape = 'u32[144,128]{1,0:T(1,128)}', space=vmem, size = 0x12000, scoped, tag = 'internal scratch']
  #allocation2 [shape = 'f32[16,128]{1,0:T(8,128)}', space=vmem, size = 0x2000, scoped, tag = 'scratch operand']
  %s0 = inlined_call_operand.vmem [shape: s32[1,256], index: 0, kind: input, shape index: {}]
  %s1 = inlined_call_operand.vmem [shape: f32[1,256], index: 1, kind: input, shape index: {}]
  %s2 = inlined_call_operand.vmem [shape: f32[16,256], index: 2, kind: input, shape index: {}]
  %s3 = inlined_call_operand.vmem [shape: f32[16,256], index: 3, kind: output, shape index: {}]
  %s4 = sld [smem:[#allocation0]]
  $region87: #{pair_random_affine_pallas.1} parent=0
    _
  %s6 = ssub.s32 1, %s4
  %s7 = scalar_select 0, %s6, %s4
  $region1: #{pair_random_affine_pallas.1} parent=0
    #allocation3 [shape = 'u8[16384]{0}', space=vmem, size = 0x4000, scoped, tag = 'output window, operand 0']
    loop: start=0, step=1, limit=4
    $region2: #{pair_random_affine_pallas.1} parent=1 // loop_pre_header
      _
    $region3: #{pair_random_affine_pallas.1} parent=1 // loop_header
      %s9 = sphi 0, %s13
      %p10 = scmp.ge.s32.totalorder %s9, 4
      %s16 = sphi 0, %s28
      %s17 = sphi 0, %s24
      %s18 = sphi 0, %s16
      %s19 = sphi 0, %s17
      %s20 = sphi 0, %s18
      %s21 = sphi 0, %s19
      %s31 = sphi 0, %s33
      %s34 = sphi 0, %s31
      %s35 = sphi 0, %s34
      %s51 = sphi 0, %s35
      %s57 = sphi 0, %s59
      %s60 = sphi 0, %s57
      %s61 = sphi 0, %s60
      %s77 = sphi 0, %s61
      %s83 = sphi 0, %s85
      %s86 = sphi 0, %s83
      %s87 = sphi 0, %s86
      %s103 = sphi 0, %s87
      %s109 = sphi 0, %s111
      %s112 = sphi 0, %s109
      %s113 = sphi 0, %s112
      %s129 = sphi 0, %s113
    $region4: #{pair_random_affine_pallas.1} parent=1 // loop_header_branch
      %12 = sbr.rel (%p10) target = $region8
    $region5: #{pair_random_affine_pallas.1} parent=1 // loop_body
      %s14 = ssub.s32 %s9, 1
      %s15 = ssub.s32 %s9, 2
      %s22 = sadd.s32 1, %s17
      %p23 = scmp.ge.s32.totalorder %s22, 1
      %s24 = scalar_select %p23, 0, %s22
      %s25 = sadd.s32 1, %s16
      %s26 = scalar_select %p23, %s25, %s16
      %p27 = scmp.ge.s32.totalorder %s26, 2
      %s28 = scalar_select %p27, 0, %s26
      %s29 = ssub.s32 %s16, %s28
      %p30 = scmp.eq.s32.totalorder %s29, 0
      %s32 = sadd.s32 %s31, 1
      %s33 = scalar_select %p30, %s31, %s32
      %p36 = pneg %p30
      %p37 = scmp.eq.s32.totalorder %s9, 1
      %p38 = por %p36, %p37
      %p39 = scmp.ne.s32.totalorder %s31, %s34
      %p40 = scmp.eq.s32.totalorder %s9, 0
      %p41 = por %p39, %p40
      %p42 = scmp.ne.s32.totalorder %s31, %s34
      %p43 = scmp.eq.s32.totalorder %s14, 1
      %p44 = por %p42, %p43
      %p45 = scmp.ne.s32.totalorder %s34, %s35
      %p46 = scmp.eq.s32.totalorder %s14, 0
      %p47 = por %p45, %p46
      %p48 = scmp.ne.s32.totalorder %s34, %s35
      %p49 = scmp.eq.s32.totalorder %s15, 1
      %p50 = por %p48, %p49
      %p52 = scmp.ne.s32.totalorder %s35, %s51
      %p53 = scmp.eq.s32.totalorder %s15, 0
      %p54 = por %p52, %p53
      %s55 = ssub.s32 %s16, %s28
      %p56 = scmp.eq.s32.totalorder %s55, 0
      %s58 = sadd.s32 %s57, 1
      %s59 = scalar_select %p56, %s57, %s58
      %p62 = pneg %p56
      %p63 = scmp.eq.s32.totalorder %s9, 1
      %p64 = por %p62, %p63
      %p65 = scmp.ne.s32.totalorder %s57, %s60
      %p66 = scmp.eq.s32.totalorder %s9, 0
      %p67 = por %p65, %p66
      %p68 = scmp.ne.s32.totalorder %s57, %s60
      %p69 = scmp.eq.s32.totalorder %s14, 1
      %p70 = por %p68, %p69
      %p71 = scmp.ne.s32.totalorder %s60, %s61
      %p72 = scmp.eq.s32.totalorder %s14, 0
      %p73 = por %p71, %p72
      %p74 = scmp.ne.s32.totalorder %s60, %s61
      %p75 = scmp.eq.s32.totalorder %s15, 1
      %p76 = por %p74, %p75
      %p78 = scmp.ne.s32.totalorder %s61, %s77
      %p79 = scmp.eq.s32.totalorder %s15, 0
      %p80 = por %p78, %p79
      %s81 = ssub.s32 %s17, %s24
      %p82 = scmp.eq.s32.totalorder %s81, 0
      %s84 = sadd.s32 %s83, 1
      %s85 = scalar_select %p82, %s83, %s84
      %p88 = pneg %p82
      %p89 = scmp.eq.s32.totalorder %s9, 1
      %p90 = por %p88, %p89
      %p91 = scmp.ne.s32.totalorder %s83, %s86
      %p92 = scmp.eq.s32.totalorder %s9, 0
      %p93 = por %p91, %p92
      %p94 = scmp.ne.s32.totalorder %s83, %s86
      %p95 = scmp.eq.s32.totalorder %s14, 1
      %p96 = por %p94, %p95
      %p97 = scmp.ne.s32.totalorder %s86, %s87
      %p98 = scmp.eq.s32.totalorder %s14, 0
      %p99 = por %p97, %p98
      %p100 = scmp.ne.s32.totalorder %s86, %s87
      %p101 = scmp.eq.s32.totalorder %s15, 1
      %p102 = por %p100, %p101
      %p104 = scmp.ne.s32.totalorder %s87, %s103
      %p105 = scmp.eq.s32.totalorder %s15, 0
      %p106 = por %p104, %p105
      %s107 = ssub.s32 %s16, %s28
      %p108 = scmp.eq.s32.totalorder %s107, 0
      %s110 = sadd.s32 %s109, 1
      %s111 = scalar_select %p108, %s109, %s110
      %p114 = pneg %p108
      %p115 = scmp.eq.s32.totalorder %s9, 1
      %p116 = por %p114, %p115
      %p117 = scmp.ne.s32.totalorder %s109, %s112
      %p118 = scmp.eq.s32.totalorder %s9, 0
      %p119 = por %p117, %p118
      %p120 = scmp.ne.s32.totalorder %s109, %s112
      %p121 = scmp.eq.s32.totalorder %s14, 1
      %p122 = por %p120, %p121
      %p123 = scmp.ne.s32.totalorder %s112, %s113
      %p124 = scmp.eq.s32.totalorder %s14, 0
      %p125 = por %p123, %p124
      %p126 = scmp.ne.s32.totalorder %s112, %s113
      %p127 = scmp.eq.s32.totalorder %s15, 1
      %p128 = por %p126, %p127
      %p130 = scmp.ne.s32.totalorder %s113, %s129
      %p131 = scmp.eq.s32.totalorder %s15, 0
      %p132 = por %p130, %p131
      %p133 = scmp.le.s32.totalorder 1, %s9
      %p134 = scmp.lt.s32.totalorder %s9, 3
      %p135 = pnand %p133, %p134
      %p136 = pneg %p135
      // Predicated region
      $region9: #{pair_random_affine_pallas.1} parent=5 // pred_check
        _
      $region10: #{pair_random_affine_pallas.1} parent=5 // pred_check_branch
        %138 = sbr.rel (%p135) target = $region12
      $region11: #{pair_random_affine_pallas.1} parent=5 // pred_region
        %s139 = ssub.s32 %s9, 1
        // Predicated region
        $region13: #{pair_random_affine_pallas.1} parent=11 // pred_check
          %p140 = pneg %p99
        $region14: #{pair_random_affine_pallas.1} parent=11 // pred_check_branch
          %142 = sbr.rel (%p140) target = $region16
        $region15: #{pair_random_affine_pallas.1} parent=11 // pred_region
          %s143 = smul.u32 2, %s19
          %p144 = scmp.lt.s32.totalorder %s143, 1
          %s145 = scalar_select %p144, %s143, 1
          %s146 = smul.addr %s145, 8
          %s147 = scalar_lea.vmem %s2, %s146
          %s148 = smul.u32 2, %s19
        $region16: #{pair_random_affine_pallas.1} parent=11 // pred_fallthru
          _
      $region12: #{pair_random_affine_pallas.1} parent=5 // pred_fallthru
        _
      %p149 = scmp.lt.s32.totalorder %s9, 2
      // Predicated region
      $region17: #{pair_random_affine_pallas.1} parent=5 // pred_check
        %p150 = pneg %p149
      $region18: #{pair_random_affine_pallas.1} parent=5 // pred_check_branch
        %152 = sbr.rel (%p150) target = $region20
      $region19: #{pair_random_affine_pallas.1} parent=5 // pred_region
        // Predicated region
        $region21: #{pair_random_affine_pallas.1} parent=19 // pred_check
          %p153 = pneg %p41
        $region22: #{pair_random_affine_pallas.1} parent=19 // pred_check_branch
          %155 = sbr.rel (%p153) target = $region24
        $region23: #{pair_random_affine_pallas.1} parent=19 // pred_region
          %p156 = scmp.lt.s32.totalorder %s16, 1
          %s157 = scalar_select %p156, %s16, 1
          %s158 = scalar_lea.vmem %s0, %s157
        $region24: #{pair_random_affine_pallas.1} parent=19 // pred_fallthru
          _
        // Predicated region
        $region25: #{pair_random_affine_pallas.1} parent=19 // pred_check
          %p159 = pneg %p67
        $region26: #{pair_random_affine_pallas.1} parent=19 // pred_check_branch
          %161 = sbr.rel (%p159) target = $region28
        $region27: #{pair_random_affine_pallas.1} parent=19 // pred_region
          %p162 = scmp.lt.s32.totalorder %s16, 1
          %s163 = scalar_select %p162, %s16, 1
          %s164 = scalar_lea.vmem %s1, %s163
        $region28: #{pair_random_affine_pallas.1} parent=19 // pred_fallthru
          _
      $region20: #{pair_random_affine_pallas.1} parent=5 // pred_fallthru
        _
      %p165 = scmp.le.s32.totalorder 1, %s9
      %p166 = scmp.lt.s32.totalorder %s9, 3
      %p167 = pnand %p165, %p166
      %p168 = pneg %p167
      // Predicated region
      $region29: #{pair_random_affine_pallas.1} parent=5 // pred_check
        _
      $region30: #{pair_random_affine_pallas.1} parent=5 // pred_check_branch
        %170 = sbr.rel (%p167) target = $region32
      $region31: #{pair_random_affine_pallas.1} parent=5 // pred_region
        %s171 = ssub.s32 %s9, 1
        %p172 = scmp.lt.s32.totalorder %s18, 1
        %s173 = scalar_select %p172, %s18, 1
        %s174 = scalar_lea.vmem %s0, %s173
        %p175 = pneg %p47
        %p176 = pneg %p44
        %p177 = scmp.lt.s32.totalorder %s18, 1
        %s178 = scalar_select %p177, %s18, 1
        %s179 = scalar_lea.vmem %s1, %s178
        %p180 = pneg %p73
        %p181 = pneg %p70
        %s182 = smul.u32 2, %s19
        %p183 = scmp.lt.s32.totalorder %s182, 1
        %s184 = scalar_select %p183, %s182, 1
        %s185 = smul.addr %s184, 8
        %s186 = scalar_lea.vmem %s2, %s185
        %p187 = pneg %p99
        %p188 = pneg %p96
        %p189 = pneg %p125
        %p190 = pneg %p122
        %s191 = sand.u32 %s112, 1
        %s192 = sand.u32 %s112, 1
        %s193 = smul.addr %s192, 16
        %s194 = scalar_lea.vmem [#allocation3], %s193
        %p195 = scmp.lt.s32.totalorder %s18, 1
        %s196 = scalar_select %p195, %s18, 1
        %s197 = scalar_lea.vmem %s0, %s196
        %p198 = scmp.lt.s32.totalorder %s18, 1
        %s199 = scalar_select %p198, %s18, 1
        %s200 = scalar_lea.vmem %s1, %s199
        %s201 = smul.u32 2, %s19
        %p202 = scmp.lt.s32.totalorder %s201, 1
        %s203 = scalar_select %p202, %s201, 1
        %s204 = smul.addr %s203, 8
        %s205 = scalar_lea.vmem %s2, %s204
        %s206 = smul.u32 2, %s19
        %p207 = scmp.eq.s32.totalorder %s19, 0
        // Predicated region
        $region33: #{pair_random_affine_pallas.1} parent=31 // pred_check
          %p208 = pneg %p207
        $region34: #{pair_random_affine_pallas.1} parent=31 // pred_check_branch
          %210 = sbr.rel (%p208) target = $region36
        $region35: #{pair_random_affine_pallas.1} parent=31 // pred_region
          %211 = vst [vmem:[#allocation2] sm:$0xff] 0.0
          %212 = vst [vmem:[#allocation2 + $0x8] sm:$0xff] 0.0
        $region36: #{pair_random_affine_pallas.1} parent=31 // pred_fallthru
          _
        %v213 = vld [vmem:[%s197] sm:$0x1]
        %s214 = smul.u32 %s19, 256
        %v215 = vstv %s214
        %v216 = vsub.s32 %v213, %v215
        %v217 = vlaneseq
        %v218 = vshrl.u32 %v217, 7
        %v219 = vadd.s32 %v218, 8
        %v220 = vadd.s32 %v218, 16
        %v221 = vadd.s32 %v218, 24
        %v222 = vadd.s32 %v218, 32
        %v223 = vadd.s32 %v218, 40
        %v224 = vadd.s32 %v218, 48
        %v225 = vadd.s32 %v218, 56
        %v226 = vadd.s32 %v218, 64
        %v227 = vadd.s32 %v218, 72
        %v228 = vadd.s32 %v218, 80
        %v229 = vadd.s32 %v218, 88
        %v230 = vadd.s32 %v218, 96
        %v231 = vadd.s32 %v218, 104
        %v232 = vadd.s32 %v218, 112
        %v233 = vadd.s32 %v218, 120
        %v234 = vadd.s32 %v218, 128
        %v235 = vadd.s32 %v218, 136
        %v236 = vadd.s32 %v218, 144
        %v237 = vadd.s32 %v218, 152
        %v238 = vadd.s32 %v218, 160
        %v239 = vadd.s32 %v218, 168
        %v240 = vadd.s32 %v218, 176
        %v241 = vadd.s32 %v218, 184
        %v242 = vadd.s32 %v218, 192
        %v243 = vadd.s32 %v218, 200
        %v244 = vadd.s32 %v218, 208
        %v245 = vadd.s32 %v218, 216
        %v246 = vadd.s32 %v218, 224
        %v247 = vadd.s32 %v218, 232
        %v248 = vadd.s32 %v218, 240
        %v249 = vadd.s32 %v218, 248
        %v250 = vlaneseq
        %v251 = vshrl.u32 %v250, 7
        %v252 = vsub.s32 0, %v251
        %v253 = vrot.slane %v216, %v252
        %vm254 = vcmp.eq.s32.totalorder %v218, %v253
        %vm255 = vcmp.eq.s32.totalorder %v219, %v253
        %vm256 = vcmp.eq.s32.totalorder %v220, %v253
        %vm257 = vcmp.eq.s32.totalorder %v221, %v253
        %vm258 = vcmp.eq.s32.totalorder %v222, %v253
        %vm259 = vcmp.eq.s32.totalorder %v223, %v253
        %vm260 = vcmp.eq.s32.totalorder %v224, %v253
        %vm261 = vcmp.eq.s32.totalorder %v225, %v253
        %vm262 = vcmp.eq.s32.totalorder %v226, %v253
        %vm263 = vcmp.eq.s32.totalorder %v227, %v253
        %vm264 = vcmp.eq.s32.totalorder %v228, %v253
        %vm265 = vcmp.eq.s32.totalorder %v229, %v253
        %vm266 = vcmp.eq.s32.totalorder %v230, %v253
        %vm267 = vcmp.eq.s32.totalorder %v231, %v253
        %vm268 = vcmp.eq.s32.totalorder %v232, %v253
        %vm269 = vcmp.eq.s32.totalorder %v233, %v253
        %vm270 = vcmp.eq.s32.totalorder %v234, %v253
        %vm271 = vcmp.eq.s32.totalorder %v235, %v253
        %vm272 = vcmp.eq.s32.totalorder %v236, %v253
        %vm273 = vcmp.eq.s32.totalorder %v237, %v253
        %vm274 = vcmp.eq.s32.totalorder %v238, %v253
        %vm275 = vcmp.eq.s32.totalorder %v239, %v253
        %vm276 = vcmp.eq.s32.totalorder %v240, %v253
        %vm277 = vcmp.eq.s32.totalorder %v241, %v253
        %vm278 = vcmp.eq.s32.totalorder %v242, %v253
        %vm279 = vcmp.eq.s32.totalorder %v243, %v253
        %vm280 = vcmp.eq.s32.totalorder %v244, %v253
        %vm281 = vcmp.eq.s32.totalorder %v245, %v253
        %vm282 = vcmp.eq.s32.totalorder %v246, %v253
        %vm283 = vcmp.eq.s32.totalorder %v247, %v253
        %vm284 = vcmp.eq.s32.totalorder %v248, %v253
        %vm285 = vcmp.eq.s32.totalorder %v249, %v253
        %v286 = vsel %vm254, 1, 0
        %v287 = vsel %vm255, 1, 0
        %v288 = vsel %vm256, 1, 0
        %v289 = vsel %vm257, 1, 0
        %v290 = vsel %vm258, 1, 0
        %v291 = vsel %vm259, 1, 0
        %v292 = vsel %vm260, 1, 0
        %v293 = vsel %vm261, 1, 0
        %v294 = vsel %vm262, 1, 0
        %v295 = vsel %vm263, 1, 0
        %v296 = vsel %vm264, 1, 0
        %v297 = vsel %vm265, 1, 0
        %v298 = vsel %vm266, 1, 0
        %v299 = vsel %vm267, 1, 0
        %v300 = vsel %vm268, 1, 0
        %v301 = vsel %vm269, 1, 0
        %v302 = vsel %vm270, 1, 0
        %v303 = vsel %vm271, 1, 0
        %v304 = vsel %vm272, 1, 0
        %v305 = vsel %vm273, 1, 0
        %v306 = vsel %vm274, 1, 0
        %v307 = vsel %vm275, 1, 0
        %v308 = vsel %vm276, 1, 0
        %v309 = vsel %vm277, 1, 0
        %v310 = vsel %vm278, 1, 0
        %v311 = vsel %vm279, 1, 0
        %v312 = vsel %vm280, 1, 0
        %v313 = vsel %vm281, 1, 0
        %v314 = vsel %vm282, 1, 0
        %v315 = vsel %vm283, 1, 0
        %v316 = vsel %vm284, 1, 0
        %v317 = vsel %vm285, 1, 0
        %v318 = vcvt.s32.f32 %v286
        %v319 = vcvt.s32.f32 %v287
        %v320 = vcvt.s32.f32 %v288
        %v321 = vcvt.s32.f32 %v289
        %v322 = vcvt.s32.f32 %v290
        %v323 = vcvt.s32.f32 %v291
        %v324 = vcvt.s32.f32 %v292
        %v325 = vcvt.s32.f32 %v293
        %v326 = vcvt.s32.f32 %v294
        %v327 = vcvt.s32.f32 %v295
        %v328 = vcvt.s32.f32 %v296
        %v329 = vcvt.s32.f32 %v297
        %v330 = vcvt.s32.f32 %v298
        %v331 = vcvt.s32.f32 %v299
        %v332 = vcvt.s32.f32 %v300
        %v333 = vcvt.s32.f32 %v301
        %v334 = vcvt.s32.f32 %v302
        %v335 = vcvt.s32.f32 %v303
        %v336 = vcvt.s32.f32 %v304
        %v337 = vcvt.s32.f32 %v305
        %v338 = vcvt.s32.f32 %v306
        %v339 = vcvt.s32.f32 %v307
        %v340 = vcvt.s32.f32 %v308
        %v341 = vcvt.s32.f32 %v309
        %v342 = vcvt.s32.f32 %v310
        %v343 = vcvt.s32.f32 %v311
        %v344 = vcvt.s32.f32 %v312
        %v345 = vcvt.s32.f32 %v313
        %v346 = vcvt.s32.f32 %v314
        %v347 = vcvt.s32.f32 %v315
        %v348 = vcvt.s32.f32 %v316
        %v349 = vcvt.s32.f32 %v317
        %v350 = vld [vmem:[#allocation2] sm:$0xff]
        %v351 = vld [vmem:[#allocation2 + $0x8] sm:$0xff]
        %v352 = vld [vmem:[%s205] sm:$0xff]
        %v353 = vld [vmem:[%s205 + $0x8] sm:$0xff]
        %v354 = vld [vmem:[%s205 + $0x10] sm:$0xff]
        %v355 = vld [vmem:[%s205 + $0x18] sm:$0xff]
        %356 = vmatprep.subr.mxu0 0.0
        %v357 = vand.u32 %v318, 4294901760
        %358 = vmatpush1.msra.mxu0 %v357
        %359 = vmatprep.subr.mxu0 0.0
        %v360 = vand.u32 %v319, 4294901760
        %361 = vmatpush1.msra.mxu0 %v360
        %362 = vmatprep.subr.mxu0 0.0
        %v363 = vand.u32 %v320, 4294901760
        %364 = vmatpush1.msra.mxu0 %v363
        %365 = vmatprep.subr.mxu0 0.0
        %v366 = vand.u32 %v321, 4294901760
        %367 = vmatpush1.msra.mxu0 %v366
        %368 = vmatprep.subr.mxu0 0.0
        %v369 = vand.u32 %v322, 4294901760
        %370 = vmatpush1.msra.mxu0 %v369
        %371 = vmatprep.subr.mxu0 0.0
        %v372 = vand.u32 %v323, 4294901760
        %373 = vmatpush1.msra.mxu0 %v372
        %374 = vmatprep.subr.mxu0 0.0
        %v375 = vand.u32 %v324, 4294901760
        %376 = vmatpush1.msra.mxu0 %v375
        %377 = vmatprep.subr.mxu0 0.0
        %v378 = vand.u32 %v325, 4294901760
        %379 = vmatpush1.msra.mxu0 %v378
        %380 = vmatprep.subr.mxu0 0.0
        %v381 = vand.u32 %v326, 4294901760
        %382 = vmatpush1.msra.mxu0 %v381
        %383 = vmatprep.subr.mxu0 0.0
        %v384 = vand.u32 %v327, 4294901760
        %385 = vmatpush1.msra.mxu0 %v384
        %386 = vmatprep.subr.mxu0 0.0
        %v387 = vand.u32 %v328, 4294901760
        %388 = vmatpush1.msra.mxu0 %v387
        %389 = vmatprep.subr.mxu0 0.0
        %v390 = vand.u32 %v329, 4294901760
        %391 = vmatpush1.msra.mxu0 %v390
        %392 = vmatprep.subr.mxu0 0.0
        %v393 = vand.u32 %v330, 4294901760
        %394 = vmatpush1.msra.mxu0 %v393
        %395 = vmatprep.subr.mxu0 0.0
        %v396 = vand.u32 %v331, 4294901760
        %397 = vmatpush1.msra.mxu0 %v396
        %398 = vmatprep.subr.mxu0 0.0
        %v399 = vand.u32 %v332, 4294901760
        %400 = vmatpush1.msra.mxu0 %v399
        %401 = vmatprep.subr.mxu0 0.0
        %v402 = vand.u32 %v333, 4294901760
        %403 = vmatpush1.msra.mxu0 %v402
        %404 = vmatprep.subr.mxu0 0.0
        %v405 = vand.u32 %v334, 4294901760
        %406 = vmatpush1.msra.mxu0 %v405
        %407 = vmatprep.subr.mxu0 0.0
        %v408 = vand.u32 %v335, 4294901760
        %409 = vmatpush1.msra.mxu0 %v408
        %410 = vmatprep.subr.mxu0 0.0
        %v411 = vand.u32 %v336, 4294901760
        %412 = vmatpush1.msra.mxu0 %v411
        %413 = vmatprep.subr.mxu0 0.0
        %v414 = vand.u32 %v337, 4294901760
        %415 = vmatpush1.msra.mxu0 %v414
        %416 = vmatprep.subr.mxu0 0.0
        %v417 = vand.u32 %v338, 4294901760
        %418 = vmatpush1.msra.mxu0 %v417
        %419 = vmatprep.subr.mxu0 0.0
        %v420 = vand.u32 %v339, 4294901760
        %421 = vmatpush1.msra.mxu0 %v420
        %422 = vmatprep.subr.mxu0 0.0
        %v423 = vand.u32 %v340, 4294901760
        %424 = vmatpush1.msra.mxu0 %v423
        %425 = vmatprep.subr.mxu0 0.0
        %v426 = vand.u32 %v341, 4294901760
        %427 = vmatpush1.msra.mxu0 %v426
        %428 = vmatprep.subr.mxu0 0.0
        %v429 = vand.u32 %v342, 4294901760
        %430 = vmatpush1.msra.mxu0 %v429
        %431 = vmatprep.subr.mxu0 0.0
        %v432 = vand.u32 %v343, 4294901760
        %433 = vmatpush1.msra.mxu0 %v432
        %434 = vmatprep.subr.mxu0 0.0
        %v435 = vand.u32 %v344, 4294901760
        %436 = vmatpush1.msra.mxu0 %v435
        %437 = vmatprep.subr.mxu0 0.0
        %v438 = vand.u32 %v345, 4294901760
        %439 = vmatpush1.msra.mxu0 %v438
        %440 = vmatprep.subr.mxu0 0.0
        %v441 = vand.u32 %v346, 4294901760
        %442 = vmatpush1.msra.mxu0 %v441
        %443 = vmatprep.subr.mxu0 0.0
        %v444 = vand.u32 %v347, 4294901760
        %445 = vmatpush1.msra.mxu0 %v444
        %446 = vmatprep.subr.mxu0 0.0
        %v447 = vand.u32 %v348, 4294901760
        %448 = vmatpush1.msra.mxu0 %v447
        %449 = vmatprep.subr.mxu0 0.0
        %v450 = vand.u32 %v349, 4294901760
        %451 = vmatpush1.msra.mxu0 %v450
        %v452 = vand.u32 %v353, 4294901760
        %v453 = vsub.f32 %v353, %v452
        %v454 = vand.u32 %v453, 4294901760
        %v455 = vsub.f32 %v453, %v454
        %v456 = vand.u32 %v455, 4294901760
        %457 = vmatprep.mubr.f32.mxu0 %v456
        %v458 = vand.u32 %v352, 4294901760
        %v459 = vsub.f32 %v352, %v458
        %v460 = vand.u32 %v459, 4294901760
        %v461 = vsub.f32 %v459, %v460
        %v462 = vand.u32 %v461, 4294901760
        %463 = vmatmul.mubr.f32.gmra.mrb[0].mxu0 %v462
        %v464 = vpop.f32.mrb[0].mxu0
        %v465 = vadd.f32 0.0, %v464
        %v466 = vpop.f32.mrb[0].mxu0
        %v467 = vand.u32 %v355, 4294901760
        %v468 = vsub.f32 %v355, %v467
        %v469 = vand.u32 %v468, 4294901760
        %v470 = vsub.f32 %v468, %v469
        %v471 = vand.u32 %v470, 4294901760
        %472 = vmatprep.mubr.f32.mxu0 %v471
        %v473 = vand.u32 %v354, 4294901760
        %v474 = vsub.f32 %v354, %v473
        %v475 = vand.u32 %v474, 4294901760
        %v476 = vsub.f32 %v474, %v475
        %v477 = vand.u32 %v476, 4294901760
        %478 = vmatmul.mubr.f32.gmra.mrb[0].mxu0 %v477
        %v479 = vpop.f32.mrb[0].mxu0
        %v480 = vadd.f32 0.0, %v479
        %v481 = vpop.f32.mrb[0].mxu0
        %482 = vdwg.mxu0
        %483 = vmatprep.subr.mxu0 0.0
        %v484 = vand.u32 %v318, 4294901760
        %v485 = vsub.f32 %v318, %v484
        %v486 = vand.u32 %v485, 4294901760
        %v487 = vsub.f32 %v485, %v486
        %v488 = vand.u32 %v487, 4294901760
        %489 = vmatpush1.msra.mxu0 %v488
        %490 = vmatprep.subr.mxu0 0.0
        %v491 = vand.u32 %v319, 4294901760
        %v492 = vsub.f32 %v319, %v491
        %v493 = vand.u32 %v492, 4294901760
        %v494 = vsub.f32 %v492, %v493
        %v495 = vand.u32 %v494, 4294901760
        %496 = vmatpush1.msra.mxu0 %v495
        %497 = vmatprep.subr.mxu0 0.0
        %v498 = vand.u32 %v320, 4294901760
        %v499 = vsub.f32 %v320, %v498
        %v500 = vand.u32 %v499, 4294901760
        %v501 = vsub.f32 %v499, %v500
        %v502 = vand.u32 %v501, 4294901760
        %503 = vmatpush1.msra.mxu0 %v502
        %504 = vmatprep.subr.mxu0 0.0
        %v505 = vand.u32 %v321, 4294901760
        %v506 = vsub.f32 %v321, %v505
        %v507 = vand.u32 %v506, 4294901760
        %v508 = vsub.f32 %v506, %v507
        %v509 = vand.u32 %v508, 4294901760
        %510 = vmatpush1.msra.mxu0 %v509
        %511 = vmatprep.subr.mxu0 0.0
        %v512 = vand.u32 %v322, 4294901760
        %v513 = vsub.f32 %v322, %v512
        %v514 = vand.u32 %v513, 4294901760
        %v515 = vsub.f32 %v513, %v514
        %v516 = vand.u32 %v515, 4294901760
        %517 = vmatpush1.msra.mxu0 %v516
        %518 = vmatprep.subr.mxu0 0.0
        %v519 = vand.u32 %v323, 4294901760
        %v520 = vsub.f32 %v323, %v519
        %v521 = vand.u32 %v520, 4294901760
        %v522 = vsub.f32 %v520, %v521
        %v523 = vand.u32 %v522, 4294901760
        %524 = vmatpush1.msra.mxu0 %v523
        %525 = vmatprep.subr.mxu0 0.0
        %v526 = vand.u32 %v324, 4294901760
        %v527 = vsub.f32 %v324, %v526
        %v528 = vand.u32 %v527, 4294901760
        %v529 = vsub.f32 %v527, %v528
        %v530 = vand.u32 %v529, 4294901760
        %531 = vmatpush1.msra.mxu0 %v530
        %532 = vmatprep.subr.mxu0 0.0
        %v533 = vand.u32 %v325, 4294901760
        %v534 = vsub.f32 %v325, %v533
        %v535 = vand.u32 %v534, 4294901760
        %v536 = vsub.f32 %v534, %v535
        %v537 = vand.u32 %v536, 4294901760
        %538 = vmatpush1.msra.mxu0 %v537
        %539 = vmatprep.subr.mxu0 0.0
        %v540 = vand.u32 %v326, 4294901760
        %v541 = vsub.f32 %v326, %v540
        %v542 = vand.u32 %v541, 4294901760
        %v543 = vsub.f32 %v541, %v542
        %v544 = vand.u32 %v543, 4294901760
        %545 = vmatpush1.msra.mxu0 %v544
        %546 = vmatprep.subr.mxu0 0.0
        %v547 = vand.u32 %v327, 4294901760
        %v548 = vsub.f32 %v327, %v547
        %v549 = vand.u32 %v548, 4294901760
        %v550 = vsub.f32 %v548, %v549
        %v551 = vand.u32 %v550, 4294901760
        %552 = vmatpush1.msra.mxu0 %v551
        %553 = vmatprep.subr.mxu0 0.0
        %v554 = vand.u32 %v328, 4294901760
        %v555 = vsub.f32 %v328, %v554
        %v556 = vand.u32 %v555, 4294901760
        %v557 = vsub.f32 %v555, %v556
        %v558 = vand.u32 %v557, 4294901760
        %559 = vmatpush1.msra.mxu0 %v558
        %560 = vmatprep.subr.mxu0 0.0
        %v561 = vand.u32 %v329, 4294901760
        %v562 = vsub.f32 %v329, %v561
        %v563 = vand.u32 %v562, 4294901760
        %v564 = vsub.f32 %v562, %v563
        %v565 = vand.u32 %v564, 4294901760
        %566 = vmatpush1.msra.mxu0 %v565
        %567 = vmatprep.subr.mxu0 0.0
        %v568 = vand.u32 %v330, 4294901760
        %v569 = vsub.f32 %v330, %v568
        %v570 = vand.u32 %v569, 4294901760
        %v571 = vsub.f32 %v569, %v570
        %v572 = vand.u32 %v571, 4294901760
        %573 = vmatpush1.msra.mxu0 %v572
        %574 = vmatprep.subr.mxu0 0.0
        %v575 = vand.u32 %v331, 4294901760
        %v576 = vsub.f32 %v331, %v575
        %v577 = vand.u32 %v576, 4294901760
        %v578 = vsub.f32 %v576, %v577
        %v579 = vand.u32 %v578, 4294901760
        %580 = vmatpush1.msra.mxu0 %v579
        %581 = vmatprep.subr.mxu0 0.0
        %v582 = vand.u32 %v332, 4294901760
        %v583 = vsub.f32 %v332, %v582
        %v584 = vand.u32 %v583, 4294901760
        %v585 = vsub.f32 %v583, %v584
        %v586 = vand.u32 %v585, 4294901760
        %587 = vmatpush1.msra.mxu0 %v586
        %588 = vmatprep.subr.mxu0 0.0
        %v589 = vand.u32 %v333, 4294901760
        %v590 = vsub.f32 %v333, %v589
        %v591 = vand.u32 %v590, 4294901760
        %v592 = vsub.f32 %v590, %v591
        %v593 = vand.u32 %v592, 4294901760
        %594 = vmatpush1.msra.mxu0 %v593
        %595 = vmatprep.subr.mxu0 0.0
        %v596 = vand.u32 %v334, 4294901760
        %v597 = vsub.f32 %v334, %v596
        %v598 = vand.u32 %v597, 4294901760
        %v599 = vsub.f32 %v597, %v598
        %v600 = vand.u32 %v599, 4294901760
        %601 = vmatpush1.msra.mxu0 %v600
        %602 = vmatprep.subr.mxu0 0.0
        %v603 = vand.u32 %v335, 4294901760
        %v604 = vsub.f32 %v335, %v603
        %v605 = vand.u32 %v604, 4294901760
        %v606 = vsub.f32 %v604, %v605
        %v607 = vand.u32 %v606, 4294901760
        %608 = vmatpush1.msra.mxu0 %v607
        %609 = vmatprep.subr.mxu0 0.0
        %v610 = vand.u32 %v336, 4294901760
        %v611 = vsub.f32 %v336, %v610
        %v612 = vand.u32 %v611, 4294901760
        %v613 = vsub.f32 %v611, %v612
        %v614 = vand.u32 %v613, 4294901760
        %615 = vmatpush1.msra.mxu0 %v614
        %616 = vmatprep.subr.mxu0 0.0
        %v617 = vand.u32 %v337, 4294901760
        %v618 = vsub.f32 %v337, %v617
        %v619 = vand.u32 %v618, 4294901760
        %v620 = vsub.f32 %v618, %v619
        %v621 = vand.u32 %v620, 4294901760
        %622 = vmatpush1.msra.mxu0 %v621
        %623 = vmatprep.subr.mxu0 0.0
        %v624 = vand.u32 %v338, 4294901760
        %v625 = vsub.f32 %v338, %v624
        %v626 = vand.u32 %v625, 4294901760
        %v627 = vsub.f32 %v625, %v626
        %v628 = vand.u32 %v627, 4294901760
        %629 = vmatpush1.msra.mxu0 %v628
        %630 = vmatprep.subr.mxu0 0.0
        %v631 = vand.u32 %v339, 4294901760
        %v632 = vsub.f32 %v339, %v631
        %v633 = vand.u32 %v632, 4294901760
        %v634 = vsub.f32 %v632, %v633
        %v635 = vand.u32 %v634, 4294901760
        %636 = vmatpush1.msra.mxu0 %v635
        %637 = vmatprep.subr.mxu0 0.0
        %v638 = vand.u32 %v340, 4294901760
        %v639 = vsub.f32 %v340, %v638
        %v640 = vand.u32 %v639, 4294901760
        %v641 = vsub.f32 %v639, %v640
        %v642 = vand.u32 %v641, 4294901760
        %643 = vmatpush1.msra.mxu0 %v642
        %644 = vmatprep.subr.mxu0 0.0
        %v645 = vand.u32 %v341, 4294901760
        %v646 = vsub.f32 %v341, %v645
        %v647 = vand.u32 %v646, 4294901760
        %v648 = vsub.f32 %v646, %v647
        %v649 = vand.u32 %v648, 4294901760
        %650 = vmatpush1.msra.mxu0 %v649
        %651 = vmatprep.subr.mxu0 0.0
        %v652 = vand.u32 %v342, 4294901760
        %v653 = vsub.f32 %v342, %v652
        %v654 = vand.u32 %v653, 4294901760
        %v655 = vsub.f32 %v653, %v654
        %v656 = vand.u32 %v655, 4294901760
        %657 = vmatpush1.msra.mxu0 %v656
        %658 = vmatprep.subr.mxu0 0.0
        %v659 = vand.u32 %v343, 4294901760
        %v660 = vsub.f32 %v343, %v659
        %v661 = vand.u32 %v660, 4294901760
        %v662 = vsub.f32 %v660, %v661
        %v663 = vand.u32 %v662, 4294901760
        %664 = vmatpush1.msra.mxu0 %v663
        %665 = vmatprep.subr.mxu0 0.0
        %v666 = vand.u32 %v344, 4294901760
        %v667 = vsub.f32 %v344, %v666
        %v668 = vand.u32 %v667, 4294901760
        %v669 = vsub.f32 %v667, %v668
        %v670 = vand.u32 %v669, 4294901760
        %671 = vmatpush1.msra.mxu0 %v670
        %672 = vmatprep.subr.mxu0 0.0
        %v673 = vand.u32 %v345, 4294901760
        %v674 = vsub.f32 %v345, %v673
        %v675 = vand.u32 %v674, 4294901760
        %v676 = vsub.f32 %v674, %v675
        %v677 = vand.u32 %v676, 4294901760
        %678 = vmatpush1.msra.mxu0 %v677
        %679 = vmatprep.subr.mxu0 0.0
        %v680 = vand.u32 %v346, 4294901760
        %v681 = vsub.f32 %v346, %v680
        %v682 = vand.u32 %v681, 4294901760
        %v683 = vsub.f32 %v681, %v682
        %v684 = vand.u32 %v683, 4294901760
        %685 = vmatpush1.msra.mxu0 %v684
        %686 = vmatprep.subr.mxu0 0.0
        %v687 = vand.u32 %v347, 4294901760
        %v688 = vsub.f32 %v347, %v687
        %v689 = vand.u32 %v688, 4294901760
        %v690 = vsub.f32 %v688, %v689
        %v691 = vand.u32 %v690, 4294901760
        %692 = vmatpush1.msra.mxu0 %v691
        %693 = vmatprep.subr.mxu0 0.0
        %v694 = vand.u32 %v348, 4294901760
        %v695 = vsub.f32 %v348, %v694
        %v696 = vand.u32 %v695, 4294901760
        %v697 = vsub.f32 %v695, %v696
        %v698 = vand.u32 %v697, 4294901760
        %699 = vmatpush1.msra.mxu0 %v698
        %700 = vmatprep.subr.mxu0 0.0
        %v701 = vand.u32 %v349, 4294901760
        %v702 = vsub.f32 %v349, %v701
        %v703 = vand.u32 %v702, 4294901760
        %v704 = vsub.f32 %v702, %v703
        %v705 = vand.u32 %v704, 4294901760
        %706 = vmatpush1.msra.mxu0 %v705
        %v707 = vand.u32 %v353, 4294901760
        %708 = vmatprep.mubr.f32.mxu0 %v707
        %v709 = vand.u32 %v352, 4294901760
        %710 = vmatmul.mubr.f32.gmra.mrb[0].mxu0 %v709
        %v711 = vpop.f32.mrb[0].mxu0
        %v712 = vadd.f32 %v465, %v711
        %v713 = vpop.f32.mrb[0].mxu0
        %v714 = vand.u32 %v355, 4294901760
        %715 = vmatprep.mubr.f32.mxu0 %v714
        %v716 = vand.u32 %v354, 4294901760
        %717 = vmatmul.mubr.f32.gmra.mrb[0].mxu0 %v716
        %v718 = vpop.f32.mrb[0].mxu0
        %v719 = vadd.f32 %v480, %v718
        %v720 = vpop.f32.mrb[0].mxu0
        %721 = vdwg.mxu0
        %722 = vmatprep.subr.mxu0 0.0
        %v723 = vand.u32 %v318, 4294901760
        %v724 = vsub.f32 %v318, %v723
        %725 = vmatpush1.msra.mxu0 %v724
        %726 = vmatprep.subr.mxu0 0.0
        %v727 = vand.u32 %v319, 4294901760
        %v728 = vsub.f32 %v319, %v727
        %729 = vmatpush1.msra.mxu0 %v728
        %730 = vmatprep.subr.mxu0 0.0
        %v731 = vand.u32 %v320, 4294901760
        %v732 = vsub.f32 %v320, %v731
        %733 = vmatpush1.msra.mxu0 %v732
        %734 = vmatprep.subr.mxu0 0.0
        %v735 = vand.u32 %v321, 4294901760
        %v736 = vsub.f32 %v321, %v735
        %737 = vmatpush1.msra.mxu0 %v736
        %738 = vmatprep.subr.mxu0 0.0
        %v739 = vand.u32 %v322, 4294901760
        %v740 = vsub.f32 %v322, %v739
        %741 = vmatpush1.msra.mxu0 %v740
        %742 = vmatprep.subr.mxu0 0.0
        %v743 = vand.u32 %v323, 4294901760
        %v744 = vsub.f32 %v323, %v743
        %745 = vmatpush1.msra.mxu0 %v744
        %746 = vmatprep.subr.mxu0 0.0
        %v747 = vand.u32 %v324, 4294901760
        %v748 = vsub.f32 %v324, %v747
        %749 = vmatpush1.msra.mxu0 %v748
        %750 = vmatprep.subr.mxu0 0.0
        %v751 = vand.u32 %v325, 4294901760
        %v752 = vsub.f32 %v325, %v751
        %753 = vmatpush1.msra.mxu0 %v752
        %754 = vmatprep.subr.mxu0 0.0
        %v755 = vand.u32 %v326, 4294901760
        %v756 = vsub.f32 %v326, %v755
        %757 = vmatpush1.msra.mxu0 %v756
        %758 = vmatprep.subr.mxu0 0.0
        %v759 = vand.u32 %v327, 4294901760
        %v760 = vsub.f32 %v327, %v759
        %761 = vmatpush1.msra.mxu0 %v760
        %762 = vmatprep.subr.mxu0 0.0
        %v763 = vand.u32 %v328, 4294901760
        %v764 = vsub.f32 %v328, %v763
        %765 = vmatpush1.msra.mxu0 %v764
        %766 = vmatprep.subr.mxu0 0.0
        %v767 = vand.u32 %v329, 4294901760
        %v768 = vsub.f32 %v329, %v767
        %769 = vmatpush1.msra.mxu0 %v768
        %770 = vmatprep.subr.mxu0 0.0
        %v771 = vand.u32 %v330, 4294901760
        %v772 = vsub.f32 %v330, %v771
        %773 = vmatpush1.msra.mxu0 %v772
        %774 = vmatprep.subr.mxu0 0.0
        %v775 = vand.u32 %v331, 4294901760
        %v776 = vsub.f32 %v331, %v775
        %777 = vmatpush1.msra.mxu0 %v776
        %778 = vmatprep.subr.mxu0 0.0
        %v779 = vand.u32 %v332, 4294901760
        %v780 = vsub.f32 %v332, %v779
        %781 = vmatpush1.msra.mxu0 %v780
        %782 = vmatprep.subr.mxu0 0.0
        %v783 = vand.u32 %v333, 4294901760
        %v784 = vsub.f32 %v333, %v783
        %785 = vmatpush1.msra.mxu0 %v784
        %786 = vmatprep.subr.mxu0 0.0
        %v787 = vand.u32 %v334, 4294901760
        %v788 = vsub.f32 %v334, %v787
        %789 = vmatpush1.msra.mxu0 %v788
        %790 = vmatprep.subr.mxu0 0.0
        %v791 = vand.u32 %v335, 4294901760
        %v792 = vsub.f32 %v335, %v791
        %793 = vmatpush1.msra.mxu0 %v792
        %794 = vmatprep.subr.mxu0 0.0
        %v795 = vand.u32 %v336, 4294901760
        %v796 = vsub.f32 %v336, %v795
        %797 = vmatpush1.msra.mxu0 %v796
        %798 = vmatprep.subr.mxu0 0.0
        %v799 = vand.u32 %v337, 4294901760
        %v800 = vsub.f32 %v337, %v799
        %801 = vmatpush1.msra.mxu0 %v800
        %802 = vmatprep.subr.mxu0 0.0
        %v803 = vand.u32 %v338, 4294901760
        %v804 = vsub.f32 %v338, %v803
        %805 = vmatpush1.msra.mxu0 %v804
        %806 = vmatprep.subr.mxu0 0.0
        %v807 = vand.u32 %v339, 4294901760
        %v808 = vsub.f32 %v339, %v807
        %809 = vmatpush1.msra.mxu0 %v808
        %810 = vmatprep.subr.mxu0 0.0
        %v811 = vand.u32 %v340, 4294901760
        %v812 = vsub.f32 %v340, %v811
        %813 = vmatpush1.msra.mxu0 %v812
        %814 = vmatprep.subr.mxu0 0.0
        %v815 = vand.u32 %v341, 4294901760
        %v816 = vsub.f32 %v341, %v815
        %817 = vmatpush1.msra.mxu0 %v816
        %818 = vmatprep.subr.mxu0 0.0
        %v819 = vand.u32 %v342, 4294901760
        %v820 = vsub.f32 %v342, %v819
        %821 = vmatpush1.msra.mxu0 %v820
        %822 = vmatprep.subr.mxu0 0.0
        %v823 = vand.u32 %v343, 4294901760
        %v824 = vsub.f32 %v343, %v823
        %825 = vmatpush1.msra.mxu0 %v824
        %826 = vmatprep.subr.mxu0 0.0
        %v827 = vand.u32 %v344, 4294901760
        %v828 = vsub.f32 %v344, %v827
        %829 = vmatpush1.msra.mxu0 %v828
        %830 = vmatprep.subr.mxu0 0.0
        %v831 = vand.u32 %v345, 4294901760
        %v832 = vsub.f32 %v345, %v831
        %833 = vmatpush1.msra.mxu0 %v832
        %834 = vmatprep.subr.mxu0 0.0
        %v835 = vand.u32 %v346, 4294901760
        %v836 = vsub.f32 %v346, %v835
        %837 = vmatpush1.msra.mxu0 %v836
        %838 = vmatprep.subr.mxu0 0.0
        %v839 = vand.u32 %v347, 4294901760
        %v840 = vsub.f32 %v347, %v839
        %841 = vmatpush1.msra.mxu0 %v840
        %842 = vmatprep.subr.mxu0 0.0
        %v843 = vand.u32 %v348, 4294901760
        %v844 = vsub.f32 %v348, %v843
        %845 = vmatpush1.msra.mxu0 %v844
        %846 = vmatprep.subr.mxu0 0.0
        %v847 = vand.u32 %v349, 4294901760
        %v848 = vsub.f32 %v349, %v847
        %849 = vmatpush1.msra.mxu0 %v848
        %v850 = vand.u32 %v353, 4294901760
        %v851 = vsub.f32 %v353, %v850
        %852 = vmatprep.mubr.f32.mxu0 %v851
        %v853 = vand.u32 %v352, 4294901760
        %v854 = vsub.f32 %v352, %v853
        %855 = vmatmul.mubr.f32.gmra.mrb[0].mxu0 %v854
        %v856 = vpop.f32.mrb[0].mxu0
        %v857 = vadd.f32 %v712, %v856
        %v858 = vpop.f32.mrb[0].mxu0
        %v859 = vand.u32 %v355, 4294901760
        %v860 = vsub.f32 %v355, %v859
        %861 = vmatprep.mubr.f32.mxu0 %v860
        %v862 = vand.u32 %v354, 4294901760
        %v863 = vsub.f32 %v354, %v862
        %864 = vmatmul.mubr.f32.gmra.mrb[0].mxu0 %v863
        %v865 = vpop.f32.mrb[0].mxu0
        %v866 = vadd.f32 %v719, %v865
        %v867 = vpop.f32.mrb[0].mxu0
        %868 = vdwg.mxu0
        %869 = vmatprep.subr.mxu0 0.0
        %v870 = vand.u32 %v318, 4294901760
        %871 = vmatpush1.msra.mxu0 %v870
        %872 = vmatprep.subr.mxu0 0.0
        %v873 = vand.u32 %v319, 4294901760
        %874 = vmatpush1.msra.mxu0 %v873
        %875 = vmatprep.subr.mxu0 0.0
        %v876 = vand.u32 %v320, 4294901760
        %877 = vmatpush1.msra.mxu0 %v876
        %878 = vmatprep.subr.mxu0 0.0
        %v879 = vand.u32 %v321, 4294901760
        %880 = vmatpush1.msra.mxu0 %v879
        %881 = vmatprep.subr.mxu0 0.0
        %v882 = vand.u32 %v322, 4294901760
        %883 = vmatpush1.msra.mxu0 %v882
        %884 = vmatprep.subr.mxu0 0.0
        %v885 = vand.u32 %v323, 4294901760
        %886 = vmatpush1.msra.mxu0 %v885
        %887 = vmatprep.subr.mxu0 0.0
        %v888 = vand.u32 %v324, 4294901760
        %889 = vmatpush1.msra.mxu0 %v888
        %890 = vmatprep.subr.mxu0 0.0
        %v891 = vand.u32 %v325, 4294901760
        %892 = vmatpush1.msra.mxu0 %v891
        %893 = vmatprep.subr.mxu0 0.0
        %v894 = vand.u32 %v326, 4294901760
        %895 = vmatpush1.msra.mxu0 %v894
        %896 = vmatprep.subr.mxu0 0.0
        %v897 = vand.u32 %v327, 4294901760
        %898 = vmatpush1.msra.mxu0 %v897
        %899 = vmatprep.subr.mxu0 0.0
        %v900 = vand.u32 %v328, 4294901760
        %901 = vmatpush1.msra.mxu0 %v900
        %902 = vmatprep.subr.mxu0 0.0
        %v903 = vand.u32 %v329, 4294901760
        %904 = vmatpush1.msra.mxu0 %v903
        %905 = vmatprep.subr.mxu0 0.0
        %v906 = vand.u32 %v330, 4294901760
        %907 = vmatpush1.msra.mxu0 %v906
        %908 = vmatprep.subr.mxu0 0.0
        %v909 = vand.u32 %v331, 4294901760
        %910 = vmatpush1.msra.mxu0 %v909
        %911 = vmatprep.subr.mxu0 0.0
        %v912 = vand.u32 %v332, 4294901760
        %913 = vmatpush1.msra.mxu0 %v912
        %914 = vmatprep.subr.mxu0 0.0
        %v915 = vand.u32 %v333, 4294901760
        %916 = vmatpush1.msra.mxu0 %v915
        %917 = vmatprep.subr.mxu0 0.0
        %v918 = vand.u32 %v334, 4294901760
        %919 = vmatpush1.msra.mxu0 %v918
        %920 = vmatprep.subr.mxu0 0.0
        %v921 = vand.u32 %v335, 4294901760
        %922 = vmatpush1.msra.mxu0 %v921
        %923 = vmatprep.subr.mxu0 0.0
        %v924 = vand.u32 %v336, 4294901760
        %925 = vmatpush1.msra.mxu0 %v924
        %926 = vmatprep.subr.mxu0 0.0
        %v927 = vand.u32 %v337, 4294901760
        %928 = vmatpush1.msra.mxu0 %v927
        %929 = vmatprep.subr.mxu0 0.0
        %v930 = vand.u32 %v338, 4294901760
        %931 = vmatpush1.msra.mxu0 %v930
        %932 = vmatprep.subr.mxu0 0.0
        %v933 = vand.u32 %v339, 4294901760
        %934 = vmatpush1.msra.mxu0 %v933
        %935 = vmatprep.subr.mxu0 0.0
        %v936 = vand.u32 %v340, 4294901760
        %937 = vmatpush1.msra.mxu0 %v936
        %938 = vmatprep.subr.mxu0 0.0
        %v939 = vand.u32 %v341, 4294901760
        %940 = vmatpush1.msra.mxu0 %v939
        %941 = vmatprep.subr.mxu0 0.0
        %v942 = vand.u32 %v342, 4294901760
        %943 = vmatpush1.msra.mxu0 %v942
        %944 = vmatprep.subr.mxu0 0.0
        %v945 = vand.u32 %v343, 4294901760
        %946 = vmatpush1.msra.mxu0 %v945
        %947 = vmatprep.subr.mxu0 0.0
        %v948 = vand.u32 %v344, 4294901760
        %949 = vmatpush1.msra.mxu0 %v948
        %950 = vmatprep.subr.mxu0 0.0
        %v951 = vand.u32 %v345, 4294901760
        %952 = vmatpush1.msra.mxu0 %v951
        %953 = vmatprep.subr.mxu0 0.0
        %v954 = vand.u32 %v346, 4294901760
        %955 = vmatpush1.msra.mxu0 %v954
        %956 = vmatprep.subr.mxu0 0.0
        %v957 = vand.u32 %v347, 4294901760
        %958 = vmatpush1.msra.mxu0 %v957
        %959 = vmatprep.subr.mxu0 0.0
        %v960 = vand.u32 %v348, 4294901760
        %961 = vmatpush1.msra.mxu0 %v960
        %962 = vmatprep.subr.mxu0 0.0
        %v963 = vand.u32 %v349, 4294901760
        %964 = vmatpush1.msra.mxu0 %v963
        %v965 = vand.u32 %v353, 4294901760
        %v966 = vsub.f32 %v353, %v965
        %v967 = vand.u32 %v966, 4294901760
        %968 = vmatprep.mubr.f32.mxu0 %v967
        %v969 = vand.u32 %v352, 4294901760
        %v970 = vsub.f32 %v352, %v969
        %v971 = vand.u32 %v970, 4294901760
        %972 = vmatmul.mubr.f32.gmra.mrb[0].mxu0 %v971
        %v973 = vpop.f32.mrb[0].mxu0
        %v974 = vadd.f32 %v857, %v973
        %v975 = vpop.f32.mrb[0].mxu0
        %v976 = vand.u32 %v355, 4294901760
        %v977 = vsub.f32 %v355, %v976
        %v978 = vand.u32 %v977, 4294901760
        %979 = vmatprep.mubr.f32.mxu0 %v978
        %v980 = vand.u32 %v354, 4294901760
        %v981 = vsub.f32 %v354, %v980
        %v982 = vand.u32 %v981, 4294901760
        %983 = vmatmul.mubr.f32.gmra.mrb[0].mxu0 %v982
        %v984 = vpop.f32.mrb[0].mxu0
        %v985 = vadd.f32 %v866, %v984
        %v986 = vpop.f32.mrb[0].mxu0
        %987 = vdwg.mxu0
        %988 = vmatprep.subr.mxu0 0.0
        %v989 = vand.u32 %v318, 4294901760
        %v990 = vsub.f32 %v318, %v989
        %v991 = vand.u32 %v990, 4294901760
        %992 = vmatpush1.msra.mxu0 %v991
        %993 = vmatprep.subr.mxu0 0.0
        %v994 = vand.u32 %v319, 4294901760
        %v995 = vsub.f32 %v319, %v994
        %v996 = vand.u32 %v995, 4294901760
        %997 = vmatpush1.msra.mxu0 %v996
        %998 = vmatprep.subr.mxu0 0.0
        %v999 = vand.u32 %v320, 4294901760
        %v1000 = vsub.f32 %v320, %v999
        %v1001 = vand.u32 %v1000, 4294901760
        %1002 = vmatpush1.msra.mxu0 %v1001
        %1003 = vmatprep.subr.mxu0 0.0
        %v1004 = vand.u32 %v321, 4294901760
        %v1005 = vsub.f32 %v321, %v1004
        %v1006 = vand.u32 %v1005, 4294901760
        %1007 = vmatpush1.msra.mxu0 %v1006
        %1008 = vmatprep.subr.mxu0 0.0
        %v1009 = vand.u32 %v322, 4294901760
        %v1010 = vsub.f32 %v322, %v1009
        %v1011 = vand.u32 %v1010, 4294901760
        %1012 = vmatpush1.msra.mxu0 %v1011
        %1013 = vmatprep.subr.mxu0 0.0
        %v1014 = vand.u32 %v323, 4294901760
        %v1015 = vsub.f32 %v323, %v1014
        %v1016 = vand.u32 %v1015, 4294901760
        %1017 = vmatpush1.msra.mxu0 %v1016
        %1018 = vmatprep.subr.mxu0 0.0
        %v1019 = vand.u32 %v324, 4294901760
        %v1020 = vsub.f32 %v324, %v1019
        %v1021 = vand.u32 %v1020, 4294901760
        %1022 = vmatpush1.msra.mxu0 %v1021
        %1023 = vmatprep.subr.mxu0 0.0
        %v1024 = vand.u32 %v325, 4294901760
        %v1025 = vsub.f32 %v325, %v1024
        %v1026 = vand.u32 %v1025, 4294901760
        %1027 = vmatpush1.msra.mxu0 %v1026
        %1028 = vmatprep.subr.mxu0 0.0
        %v1029 = vand.u32 %v326, 4294901760
        %v1030 = vsub.f32 %v326, %v1029
        %v1031 = vand.u32 %v1030, 4294901760
        %1032 = vmatpush1.msra.mxu0 %v1031
        %1033 = vmatprep.subr.mxu0 0.0
        %v1034 = vand.u32 %v327, 4294901760
        %v1035 = vsub.f32 %v327, %v1034
        %v1036 = vand.u32 %v1035, 4294901760
        %1037 = vmatpush1.msra.mxu0 %v1036
        %1038 = vmatprep.subr.mxu0 0.0
        %v1039 = vand.u32 %v328, 4294901760
        %v1040 = vsub.f32 %v328, %v1039
        %v1041 = vand.u32 %v1040, 4294901760
        %1042 = vmatpush1.msra.mxu0 %v1041
        %1043 = vmatprep.subr.mxu0 0.0
        %v1044 = vand.u32 %v329, 4294901760
        %v1045 = vsub.f32 %v329, %v1044
        %v1046 = vand.u32 %v1045, 4294901760
        %1047 = vmatpush1.msra.mxu0 %v1046
        %1048 = vmatprep.subr.mxu0 0.0
        %v1049 = vand.u32 %v330, 4294901760
        %v1050 = vsub.f32 %v330, %v1049
        %v1051 = vand.u32 %v1050, 4294901760
        %1052 = vmatpush1.msra.mxu0 %v1051
        %1053 = vmatprep.subr.mxu0 0.0
        %v1054 = vand.u32 %v331, 4294901760
        %v1055 = vsub.f32 %v331, %v1054
        %v1056 = vand.u32 %v1055, 4294901760
        %1057 = vmatpush1.msra.mxu0 %v1056
        %1058 = vmatprep.subr.mxu0 0.0
        %v1059 = vand.u32 %v332, 4294901760
        %v1060 = vsub.f32 %v332, %v1059
        %v1061 = vand.u32 %v1060, 4294901760
        %1062 = vmatpush1.msra.mxu0 %v1061
        %1063 = vmatprep.subr.mxu0 0.0
        %v1064 = vand.u32 %v333, 4294901760
        %v1065 = vsub.f32 %v333, %v1064
        %v1066 = vand.u32 %v1065, 4294901760
        %1067 = vmatpush1.msra.mxu0 %v1066
        %1068 = vmatprep.subr.mxu0 0.0
        %v1069 = vand.u32 %v334, 4294901760
        %v1070 = vsub.f32 %v334, %v1069
        %v1071 = vand.u32 %v1070, 4294901760
        %1072 = vmatpush1.msra.mxu0 %v1071
        %1073 = vmatprep.subr.mxu0 0.0
        %v1074 = vand.u32 %v335, 4294901760
        %v1075 = vsub.f32 %v335, %v1074
        %v1076 = vand.u32 %v1075, 4294901760
        %1077 = vmatpush1.msra.mxu0 %v1076
        %1078 = vmatprep.subr.mxu0 0.0
        %v1079 = vand.u32 %v336, 4294901760
        %v1080 = vsub.f32 %v336, %v1079
        %v1081 = vand.u32 %v1080, 4294901760
        %1082 = vmatpush1.msra.mxu0 %v1081
        %1083 = vmatprep.subr.mxu0 0.0
        %v1084 = vand.u32 %v337, 4294901760
        %v1085 = vsub.f32 %v337, %v1084
        %v1086 = vand.u32 %v1085, 4294901760
        %1087 = vmatpush1.msra.mxu0 %v1086
        %1088 = vmatprep.subr.mxu0 0.0
        %v1089 = vand.u32 %v338, 4294901760
        %v1090 = vsub.f32 %v338, %v1089
        %v1091 = vand.u32 %v1090, 4294901760
        %1092 = vmatpush1.msra.mxu0 %v1091
        %1093 = vmatprep.subr.mxu0 0.0
        %v1094 = vand.u32 %v339, 4294901760
        %v1095 = vsub.f32 %v339, %v1094
        %v1096 = vand.u32 %v1095, 4294901760
        %1097 = vmatpush1.msra.mxu0 %v1096
        %1098 = vmatprep.subr.mxu0 0.0
        %v1099 = vand.u32 %v340, 4294901760
        %v1100 = vsub.f32 %v340, %v1099
        %v1101 = vand.u32 %v1100, 4294901760
        %1102 = vmatpush1.msra.mxu0 %v1101
        %1103 = vmatprep.subr.mxu0 0.0
        %v1104 = vand.u32 %v341, 4294901760
        %v1105 = vsub.f32 %v341, %v1104
        %v1106 = vand.u32 %v1105, 4294901760
        %1107 = vmatpush1.msra.mxu0 %v1106
        %1108 = vmatprep.subr.mxu0 0.0
        %v1109 = vand.u32 %v342, 4294901760
        %v1110 = vsub.f32 %v342, %v1109
        %v1111 = vand.u32 %v1110, 4294901760
        %1112 = vmatpush1.msra.mxu0 %v1111
        %1113 = vmatprep.subr.mxu0 0.0
        %v1114 = vand.u32 %v343, 4294901760
        %v1115 = vsub.f32 %v343, %v1114
        %v1116 = vand.u32 %v1115, 4294901760
        %1117 = vmatpush1.msra.mxu0 %v1116
        %1118 = vmatprep.subr.mxu0 0.0
        %v1119 = vand.u32 %v344, 4294901760
        %v1120 = vsub.f32 %v344, %v1119
        %v1121 = vand.u32 %v1120, 4294901760
        %1122 = vmatpush1.msra.mxu0 %v1121
        %1123 = vmatprep.subr.mxu0 0.0
        %v1124 = vand.u32 %v345, 4294901760
        %v1125 = vsub.f32 %v345, %v1124
        %v1126 = vand.u32 %v1125, 4294901760
        %1127 = vmatpush1.msra.mxu0 %v1126
        %1128 = vmatprep.subr.mxu0 0.0
        %v1129 = vand.u32 %v346, 4294901760
        %v1130 = vsub.f32 %v346, %v1129
        %v1131 = vand.u32 %v1130, 4294901760
        %1132 = vmatpush1.msra.mxu0 %v1131
        %1133 = vmatprep.subr.mxu0 0.0
        %v1134 = vand.u32 %v347, 4294901760
        %v1135 = vsub.f32 %v347, %v1134
        %v1136 = vand.u32 %v1135, 4294901760
        %1137 = vmatpush1.msra.mxu0 %v1136
        %1138 = vmatprep.subr.mxu0 0.0
        %v1139 = vand.u32 %v348, 4294901760
        %v1140 = vsub.f32 %v348, %v1139
        %v1141 = vand.u32 %v1140, 4294901760
        %1142 = vmatpush1.msra.mxu0 %v1141
        %1143 = vmatprep.subr.mxu0 0.0
        %v1144 = vand.u32 %v349, 4294901760
        %v1145 = vsub.f32 %v349, %v1144
        %v1146 = vand.u32 %v1145, 4294901760
        %1147 = vmatpush1.msra.mxu0 %v1146
        %v1148 = vand.u32 %v353, 4294901760
        %1149 = vmatprep.mubr.f32.mxu0 %v1148
        %v1150 = vand.u32 %v352, 4294901760
        %1151 = vmatmul.mubr.f32.gmra.mrb[0].mxu0 %v1150
        %v1152 = vpop.f32.mrb[0].mxu0
        %v1153 = vadd.f32 %v974, %v1152
        %v1154 = vpop.f32.mrb[0].mxu0
        %v1155 = vand.u32 %v355, 4294901760
        %1156 = vmatprep.mubr.f32.mxu0 %v1155
        %v1157 = vand.u32 %v354, 4294901760
        %1158 = vmatmul.mubr.f32.gmra.mrb[0].mxu0 %v1157
        %v1159 = vpop.f32.mrb[0].mxu0
        %v1160 = vadd.f32 %v985, %v1159
        %v1161 = vpop.f32.mrb[0].mxu0
        %1162 = vdwg.mxu0
        %1163 = vmatprep.subr.mxu0 0.0
        %v1164 = vand.u32 %v318, 4294901760
        %1165 = vmatpush1.msra.mxu0 %v1164
        %1166 = vmatprep.subr.mxu0 0.0
        %v1167 = vand.u32 %v319, 4294901760
        %1168 = vmatpush1.msra.mxu0 %v1167
        %1169 = vmatprep.subr.mxu0 0.0
        %v1170 = vand.u32 %v320, 4294901760
        %1171 = vmatpush1.msra.mxu0 %v1170
        %1172 = vmatprep.subr.mxu0 0.0
        %v1173 = vand.u32 %v321, 4294901760
        %1174 = vmatpush1.msra.mxu0 %v1173
        %1175 = vmatprep.subr.mxu0 0.0
        %v1176 = vand.u32 %v322, 4294901760
        %1177 = vmatpush1.msra.mxu0 %v1176
        %1178 = vmatprep.subr.mxu0 0.0
        %v1179 = vand.u32 %v323, 4294901760
        %1180 = vmatpush1.msra.mxu0 %v1179
        %1181 = vmatprep.subr.mxu0 0.0
        %v1182 = vand.u32 %v324, 4294901760
        %1183 = vmatpush1.msra.mxu0 %v1182
        %1184 = vmatprep.subr.mxu0 0.0
        %v1185 = vand.u32 %v325, 4294901760
        %1186 = vmatpush1.msra.mxu0 %v1185
        %1187 = vmatprep.subr.mxu0 0.0
        %v1188 = vand.u32 %v326, 4294901760
        %1189 = vmatpush1.msra.mxu0 %v1188
        %1190 = vmatprep.subr.mxu0 0.0
        %v1191 = vand.u32 %v327, 4294901760
        %1192 = vmatpush1.msra.mxu0 %v1191
        %1193 = vmatprep.subr.mxu0 0.0
        %v1194 = vand.u32 %v328, 4294901760
        %1195 = vmatpush1.msra.mxu0 %v1194
        %1196 = vmatprep.subr.mxu0 0.0
        %v1197 = vand.u32 %v329, 4294901760
        %1198 = vmatpush1.msra.mxu0 %v1197
        %1199 = vmatprep.subr.mxu0 0.0
        %v1200 = vand.u32 %v330, 4294901760
        %1201 = vmatpush1.msra.mxu0 %v1200
        %1202 = vmatprep.subr.mxu0 0.0
        %v1203 = vand.u32 %v331, 4294901760
        %1204 = vmatpush1.msra.mxu0 %v1203
        %1205 = vmatprep.subr.mxu0 0.0
        %v1206 = vand.u32 %v332, 4294901760
        %1207 = vmatpush1.msra.mxu0 %v1206
        %1208 = vmatprep.subr.mxu0 0.0
        %v1209 = vand.u32 %v333, 4294901760
        %1210 = vmatpush1.msra.mxu0 %v1209
        %1211 = vmatprep.subr.mxu0 0.0
        %v1212 = vand.u32 %v334, 4294901760
        %1213 = vmatpush1.msra.mxu0 %v1212
        %1214 = vmatprep.subr.mxu0 0.0
        %v1215 = vand.u32 %v335, 4294901760
        %1216 = vmatpush1.msra.mxu0 %v1215
        %1217 = vmatprep.subr.mxu0 0.0
        %v1218 = vand.u32 %v336, 4294901760
        %1219 = vmatpush1.msra.mxu0 %v1218
        %1220 = vmatprep.subr.mxu0 0.0
        %v1221 = vand.u32 %v337, 4294901760
        %1222 = vmatpush1.msra.mxu0 %v1221
        %1223 = vmatprep.subr.mxu0 0.0
        %v1224 = vand.u32 %v338, 4294901760
        %1225 = vmatpush1.msra.mxu0 %v1224
        %1226 = vmatprep.subr.mxu0 0.0
        %v1227 = vand.u32 %v339, 4294901760
        %1228 = vmatpush1.msra.mxu0 %v1227
        %1229 = vmatprep.subr.mxu0 0.0
        %v1230 = vand.u32 %v340, 4294901760
        %1231 = vmatpush1.msra.mxu0 %v1230
        %1232 = vmatprep.subr.mxu0 0.0
        %v1233 = vand.u32 %v341, 4294901760
        %1234 = vmatpush1.msra.mxu0 %v1233
        %1235 = vmatprep.subr.mxu0 0.0
        %v1236 = vand.u32 %v342, 4294901760
        %1237 = vmatpush1.msra.mxu0 %v1236
        %1238 = vmatprep.subr.mxu0 0.0
        %v1239 = vand.u32 %v343, 4294901760
        %1240 = vmatpush1.msra.mxu0 %v1239
        %1241 = vmatprep.subr.mxu0 0.0
        %v1242 = vand.u32 %v344, 4294901760
        %1243 = vmatpush1.msra.mxu0 %v1242
        %1244 = vmatprep.subr.mxu0 0.0
        %v1245 = vand.u32 %v345, 4294901760
        %1246 = vmatpush1.msra.mxu0 %v1245
        %1247 = vmatprep.subr.mxu0 0.0
        %v1248 = vand.u32 %v346, 4294901760
        %1249 = vmatpush1.msra.mxu0 %v1248
        %1250 = vmatprep.subr.mxu0 0.0
        %v1251 = vand.u32 %v347, 4294901760
        %1252 = vmatpush1.msra.mxu0 %v1251
        %1253 = vmatprep.subr.mxu0 0.0
        %v1254 = vand.u32 %v348, 4294901760
        %1255 = vmatpush1.msra.mxu0 %v1254
        %1256 = vmatprep.subr.mxu0 0.0
        %v1257 = vand.u32 %v349, 4294901760
        %1258 = vmatpush1.msra.mxu0 %v1257
        %v1259 = vand.u32 %v353, 4294901760
        %1260 = vmatprep.mubr.f32.mxu0 %v1259
        %v1261 = vand.u32 %v352, 4294901760
        %1262 = vmatmul.mubr.f32.gmra.mrb[0].mxu0 %v1261
        %v1263 = vpop.f32.mrb[0].mxu0
        %v1264 = vadd.f32 %v1153, %v1263
        %v1265 = vpop.f32.mrb[0].mxu0
        %v1266 = vand.u32 %v355, 4294901760
        %1267 = vmatprep.mubr.f32.mxu0 %v1266
        %v1268 = vand.u32 %v354, 4294901760
        %1269 = vmatmul.mubr.f32.gmra.mrb[0].mxu0 %v1268
        %v1270 = vpop.f32.mrb[0].mxu0
        %v1271 = vadd.f32 %v1160, %v1270
        %v1272 = vpop.f32.mrb[0].mxu0
        %1273 = vdwg.mxu0
        %v1274 = vadd.f32 %v350, %v1264
        %v1275 = vadd.f32 %v351, %v1271
        %1276 = vst [vmem:[#allocation2] sm:$0xff] %v1274
        %1277 = vst [vmem:[#allocation2 + $0x8] sm:$0xff] %v1275
        // Predicated region
        $region37: #{pair_random_affine_pallas.1} parent=31 // pred_check
          %p1278 = pneg %p207
        $region38: #{pair_random_affine_pallas.1} parent=31 // pred_check_branch
          %1280 = sbr.rel (%p1278) target = $region40
        $region39: #{pair_random_affine_pallas.1} parent=31 // pred_region
          %v1281 = vld [vmem:[%s200] sm:$0x1]
          %vm1282 = vcmp.ne.f32.partialorder %v1281, 0.0
          %v1283 = vld [vmem:[#allocation2] sm:$0xff]
          %v1284 = vld [vmem:[#allocation2 + $0x8] sm:$0xff]
          %v1285 = vsel %vm1282, 1, 0
          %v1286 = vlaneseq
          %v1287 = vshrl.u32 %v1286, 7
          %v1288 = vsub.s32 0, %v1287
          %v1289 = vrot.slane %v1285, %v1288
          %vm1290 = vcmp.eq.s32.totalorder %v1289, 1
          %v1291 = vsel %vm1290, %v1283, 0.0
          %v1292 = vsel %vm1290, %v1284, 0.0
          %1293 = vst [vmem:[%s194] sm:$0xff] %v1291
          %1294 = vst [vmem:[%s194 + $0x8] sm:$0xff] %v1292
        $region40: #{pair_random_affine_pallas.1} parent=31 // pred_fallthru
          _
        %s1295 = sand.u32 %s112, 1
        %s1296 = sand.u32 %s112, 1
        %s1297 = smul.addr %s1296, 16
        %s1298 = scalar_lea.vmem [#allocation3], %s1297
        // Predicated region
        $region41: #{pair_random_affine_pallas.1} parent=31 // pred_check
          %p1299 = pneg %p122
        $region42: #{pair_random_affine_pallas.1} parent=31 // pred_check_branch
          %1301 = sbr.rel (%p1299) target = $region44
        $region43: #{pair_random_affine_pallas.1} parent=31 // pred_region
          %s1302 = smul.addr %s18, 8
          %s1303 = scalar_lea.vmem %s3, %s1302
          // Predicated region
          $region45: #{pair_random_affine_pallas.1} parent=43 // pred_check
            _
          $region46: #{pair_random_affine_pallas.1} parent=43 // pred_check_branch
            %1305 = sbr.rel (0) target = $region48
          $region47: #{pair_random_affine_pallas.1} parent=43 // pred_region
            // Predicated region
            $region49: #{pair_random_affine_pallas.1} parent=47 // pred_check
              _
            $region50: #{pair_random_affine_pallas.1} parent=47 // pred_check_branch
              %1307 = sbr.rel (0) target = $region52
            $region51: #{pair_random_affine_pallas.1} parent=47 // pred_region
              // Predicated region
              $region64: #{pair_random_affine_pallas.1} parent=51 // pred_check
                _
              $region65: #{pair_random_affine_pallas.1} parent=51 // pred_check_branch
                %1324 = sbr.rel (0) target = $region67
              $region66: #{pair_random_affine_pallas.1} parent=51 // pred_region
                loop: start=0, step=1, limit=1
                $region68: #{pair_random_affine_pallas.1} parent=66 // loop_pre_header
                  _
                $region69: #{pair_random_affine_pallas.1} parent=66 // loop_header
                  %s1326 = sphi 0, %s1330
                  %p1327 = scmp.ge.s32.totalorder %s1326, 1
                  %s1331 = sphi %s1298, %s1298
                  %s1332 = sphi %s1303, %s1303
                $region70: #{pair_random_affine_pallas.1} parent=66 // loop_header_branch
                  %1329 = sbr.rel (%p1327) target = $region74
                $region71: #{pair_random_affine_pallas.1} parent=66 // loop_body
                  %v1333 = vld [vmem:[%s1331] sm:$0xff]
                  %1334 = vst [vmem:[%s1332] sm:$0xff] %v1333
                  %v1335 = vld [vmem:[%s1331 + $0x8] sm:$0xff]
                  %1336 = vst [vmem:[%s1332 + $0x10] sm:$0xff] %v1335
                $region72: #{pair_random_affine_pallas.1} parent=66 // loop_footer
                  %s1330 = sadd.s32 1, %s1326
                $region73: #{pair_random_affine_pallas.1} parent=66 // loop_footer_branch
                  %1325 = sbr.rel target = $region69
                $region74: #{pair_random_affine_pallas.1} parent=66 // loop_exit
                  _
              $region67: #{pair_random_affine_pallas.1} parent=51 // pred_fallthru
                _
              // Predicated region
              $region75: #{pair_random_affine_pallas.1} parent=51 // pred_check
                _
              $region76: #{pair_random_affine_pallas.1} parent=51 // pred_check_branch
                %1338 = sbr.rel target = $region78
              $region77: #{pair_random_affine_pallas.1} parent=51 // pred_region
                _
              $region78: #{pair_random_affine_pallas.1} parent=51 // pred_fallthru
                _
            $region52: #{pair_random_affine_pallas.1} parent=47 // pred_fallthru
              _
            // Predicated region
            $region53: #{pair_random_affine_pallas.1} parent=47 // pred_check
              _
            $region54: #{pair_random_affine_pallas.1} parent=47 // pred_check_branch
              %1309 = sbr.rel target = $region56
            $region55: #{pair_random_affine_pallas.1} parent=47 // pred_region
              loop: start=0, step=1, limit=1
              $region57: #{pair_random_affine_pallas.1} parent=55 // loop_pre_header
                _
              $region58: #{pair_random_affine_pallas.1} parent=55 // loop_header
                %s1312 = sphi 0, %s1316
                %p1313 = scmp.ge.s32.totalorder %s1312, 1
                %s1317 = sphi %s1298, %s1298
                %s1318 = sphi %s1303, %s1303
              $region59: #{pair_random_affine_pallas.1} parent=55 // loop_header_branch
                %1315 = sbr.rel (%p1313) target = $region63
              $region60: #{pair_random_affine_pallas.1} parent=55 // loop_body
                %v1319 = vld [vmem:[%s1317] sm:$0xff]
                %1320 = vst [vmem:[%s1318] sm:$0xff] %v1319
                %v1321 = vld [vmem:[%s1317 + $0x8] sm:$0xff]
                %1322 = vst [vmem:[%s1318 + $0x10] sm:$0xff] %v1321
              $region61: #{pair_random_affine_pallas.1} parent=55 // loop_footer
                %s1316 = sadd.s32 1, %s1312
              $region62: #{pair_random_affine_pallas.1} parent=55 // loop_footer_branch
                %1311 = sbr.rel target = $region58
              $region63: #{pair_random_affine_pallas.1} parent=55 // loop_exit
                _
            $region56: #{pair_random_affine_pallas.1} parent=47 // pred_fallthru
              _
          $region48: #{pair_random_affine_pallas.1} parent=43 // pred_fallthru
            _
          %1339 = vnop
        $region44: #{pair_random_affine_pallas.1} parent=31 // pred_fallthru
          _
      $region32: #{pair_random_affine_pallas.1} parent=5 // pred_fallthru
        _
      %p1340 = scmp.le.s32.totalorder 2, %s9
      // Predicated region
      $region79: #{pair_random_affine_pallas.1} parent=5 // pred_check
        %p1341 = pneg %p1340
      $region80: #{pair_random_affine_pallas.1} parent=5 // pred_check_branch
        %1343 = sbr.rel (%p1341) target = $region82
      $region81: #{pair_random_affine_pallas.1} parent=5 // pred_region
        %s1344 = ssub.s32 %s9, 2
        // Predicated region
        $region83: #{pair_random_affine_pallas.1} parent=81 // pred_check
          %p1345 = pneg %p128
        $region84: #{pair_random_affine_pallas.1} parent=81 // pred_check_branch
          %1347 = sbr.rel (%p1345) target = $region86
        $region85: #{pair_random_affine_pallas.1} parent=81 // pred_region
          %s1348 = sand.u32 %s113, 1
          %s1349 = sand.u32 %s113, 1
          %s1350 = smul.addr %s1349, 16
          %s1351 = scalar_lea.vmem [#allocation3], %s1350
        $region86: #{pair_random_affine_pallas.1} parent=81 // pred_fallthru
          _
      $region82: #{pair_random_affine_pallas.1} parent=5 // pred_fallthru
        _
    $region6: #{pair_random_affine_pallas.1} parent=1 // loop_footer
      %s13 = sadd.s32 1, %s9
    $region7: #{pair_random_affine_pallas.1} parent=1 // loop_footer_branch
      %8 = sbr.rel target = $region3
    $region8: #{pair_random_affine_pallas.1} parent=1 // loop_exit
      _

</llo_original>
